<compile_context>
chip_gen: v6e
topology: v6e:2x2x1
jax: 0.10.0
libtpu: 0.0.40
codegen_flags: <defaults>
</compile_context>

<pallas_src>
import functools

import jax
import jax.numpy as jnp
from jax import lax
from jax.experimental import pallas as pl
from jax.experimental.pallas import tpu as pltpu


# ---------------------------------------------------------------------------
# Pallas kernels
# ---------------------------------------------------------------------------

def _sv_blur_kernel(pad_ref, w_ref, out_ref, *, l, n_row_tiles):
    """Spatially-variant blur: one kernel-batch kb x one row tile per grid step.

    pad_ref: (C, 1, H_p, W_p)  padded images sharing kernel batch kb (full padded image;
             its block index ignores the row axis, so it is fetched once per kb)
    w_ref:   (1, l*l, H_t, W)  per-pixel tap weights for this row tile (tap-major,
             possibly bf16 — upcast right before the multiply)
    out_ref: (C, 1, H_t, W)
    """
    C = out_ref.shape[0]
    H_t, W = out_ref.shape[-2], out_ref.shape[-1]
    r0 = 0 if n_row_tiles == 1 else pl.multiple_of(pl.program_id(1) * H_t, H_t)

    def taps_for_row(i, accs):
        accs = list(accs)
        for j in range(l):
            # One weight load + upcast per tap, shared by all C channels.
            w_t = w_ref[0, i * l + j, :, :].astype(jnp.float32)
            for c in range(C):
                # Shifted window loaded directly: the (row, column) shift rides the vld,
                # no materialized in-register slice copy.
                img = pad_ref[c, 0, pl.ds(r0 + i, H_t), j:j + W].astype(jnp.float32)
                accs[c] = accs[c] + img * w_t
        return tuple(accs)

    zero = tuple(jnp.zeros((H_t, W), jnp.float32) for _ in range(C))
    if l <= 7:
        # Small kernels: fully unrolled taps (best LLO scheduling).
        accs = zero
        for i in range(l):
            accs = taps_for_row(i, accs)
    else:
        # Large kernels (module default l=19 -> 361 taps): one fori_loop over kernel rows
        # carrying all C accumulators, bounding live ranges and compile time.
        accs = lax.fori_loop(0, l, taps_for_row, zero, unroll=2)

    for c in range(C):
        out_ref[c, 0, :, :] = accs[c].astype(out_ref.dtype)


def _uniform_blur_kernel(k_ref, pad_ref, out_ref, *, l, n_row_tiles):
    """Spatially-uniform blur; k_ref is the flat (l*l,) kernel living in SMEM."""
    C = out_ref.shape[0]
    H_t, W = out_ref.shape[-2], out_ref.shape[-1]
    r0 = 0 if n_row_tiles == 1 else pl.multiple_of(pl.program_id(1) * H_t, H_t)

    def taps_for_row(i, accs):
        accs = list(accs)
        for j in range(l):
            kv = k_ref[i * l + j]              # one SMEM scalar read per tap
            for c in range(C):
                img = pad_ref[c, 0, pl.ds(r0 + i, H_t), j:j + W].astype(jnp.float32)
                accs[c] = accs[c] + img * kv
        return tuple(accs)

    zero = tuple(jnp.zeros((H_t, W), jnp.float32) for _ in range(C))
    if l <= 7:
        accs = zero
        for i in range(l):
            accs = taps_for_row(i, accs)
    else:
        accs = lax.fori_loop(0, l, taps_for_row, zero, unroll=2)

    for c in range(C):
        out_ref[c, 0, :, :] = accs[c].astype(out_ref.dtype)


# ---------------------------------------------------------------------------
# Wrapper (glue: padding, layout, tile sizing)
# ---------------------------------------------------------------------------

def _pad_like_torch(x, l, padmode):
    if l % 2 == 1:
        left = right = top = bottom = l // 2
    else:
        # PyTorch pad tuple is (left, right, top, bottom) = (l//2, l//2-1, l//2, l//2-1).
        left, top = l // 2, l // 2
        right, bottom = l // 2 - 1, l // 2 - 1
    mode = {"reflection": "reflect", "zero": "constant", "replication": "edge"}[padmode]
    pw = ((0, 0), (0, 0), (top, bottom), (left, right))
    if mode == "constant":
        return jnp.pad(x, pw, mode="constant", constant_values=0.0)
    return jnp.pad(x, pw, mode=mode)


def _vmem_capacity_bytes():
    try:
        return int(getattr(pltpu.get_tpu_info(), "vmem_capacity_bytes", 64 << 20))
    except Exception:
        return 64 << 20  # conservative default (v7x physical VMEM)


def _choose_row_tile(H, align, bytes_per_row, budget_bytes, rows_cap):
    """Pick a row-tile height: a multiple of `align` within the VMEM budget and the
    accumulator-vreg cap.  The caller pads the output row dim up to a multiple of the
    tile, so the tile does NOT have to divide H (no full-H fallback)."""
    if H <= align:
        return H
    max_rows = min(rows_cap, budget_bytes // max(bytes_per_row, 1))
    max_rows = max(align, (max_rows // align) * align)
    h_up = -(-H // align) * align
    return min(max_rows, h_up)


def prepare_sv_kernel(kernel, H, W, l, weight_dtype=jnp.bfloat16):
    """(B, H*W, l, l) -> tap-major (B, l*l, H, W), cast for streaming.

    The transpose is a full HBM read+write of the weight tensor; if the same kernel set
    is reused across calls, do this once and pass kernel_tap_major=True to batch_blur_sv.
    The dtype cast is fused into the transpose's write pass (halves it for bf16)."""
    B = kernel.shape[0]
    w = jnp.transpose(kernel.reshape(B, H, W, l * l), (0, 3, 1, 2))
    return w.astype(weight_dtype)


def batch_blur_sv(x, kernel, l=19, padmode="reflection", *, row_tile=None,
                  weight_dtype=jnp.bfloat16, kernel_tap_major=False):
    """Forward pass of BatchBlur_SV.

    x:      (B, C, H, W) float32
    kernel: (l, l)  OR  (B, H*W, l, l)  OR tap-major (B, l*l, H, W) if kernel_tap_major
    weight_dtype: streaming dtype for the per-pixel weights (bf16 halves the dominant
                  HBM stream on v5e/v6e; use jnp.float32 for bit-faithful weights).
    """
    B, C, H, W = x.shape
    padded = _pad_like_torch(x, l, padmode)
    H_p, W_p = padded.shape[-2:]

    uniform = (kernel.ndim == 2)
    if weight_dtype is None:
        weight_dtype = jnp.float32
    if not uniform:
        # The PyTorch module hard-codes expand(3, ...) in this branch.
        assert C == 3, "spatially-variant branch of BatchBlur_SV requires C == 3"
        if kernel_tap_major:
            assert kernel.shape == (B, l * l, H, W)
            w = kernel
        else:
            assert kernel.shape == (B, H * W, l, l)
            w = prepare_sv_kernel(kernel, H, W, l, weight_dtype)

    # Group the B*C padded images by the kernel batch they use.  Flat image n = b*C + c
    # uses kernel batch n % B (faithful reproduction of the PyTorch view/expand quirk);
    # reshaping (B, C, ...) -> (C, B, ...) is a *free* view that puts the C images sharing
    # kernel batch kb into column kb, so each weight element is read from HBM once.
    pad_g = padded.reshape(C, B, H_p, W_p)

    # ---- generation-aware tile sizing ----
    x_item = jnp.dtype(x.dtype).itemsize
    w_item = 0 if uniform else jnp.dtype(w.dtype).itemsize
    # 16-row alignment keeps 16-bit streamed operands packing-aligned per row tile.
    align = 16 if (x_item < 4 or (w_item and w_item < 4)) else 8
    vmem_cap = _vmem_capacity_bytes()
    img_bytes = 2 * C * H_p * W_p * x_item                     # dbl-buffered pad block
    taps = 0 if uniform else l * l
    bytes_per_row = 2 * W * (taps * w_item + C * x_item)       # dbl-buffered weight + out
    budget = max(int(vmem_cap * 0.55) - img_bytes, align * bytes_per_row)
    # Keep the C simultaneously-live f32 accumulators within ~24 vregs (96 KiB) total.
    rows_cap = max(align, (96 * 1024) // (4 * W * C))
    if row_tile is not None:
        assert row_tile == H or row_tile % align == 0, \
            f"row_tile must equal H or be a multiple of {align}"
        H_t = row_tile
    else:
        H_t = _choose_row_tile(H, align, bytes_per_row, budget, rows_cap)
    H_eff = -(-H // H_t) * H_t
    n_row_tiles = H_eff // H_t

    # Pad the output row dim (and the arrays the kernel reads) when the tile doesn't
    # divide H; the extra rows are computed then sliced off (cheap for the last tile only).
    if H_eff > H:
        extra = H_eff - H
        pad_g = jnp.pad(pad_g, ((0, 0), (0, 0), (0, extra), (0, 0)))
        H_p = H_p + extra
        if not uniform:
            w = jnp.pad(w, ((0, 0), (0, 0), (0, extra), (0, 0)))

    need = img_bytes + H_t * bytes_per_row + (12 << 20)
    vmem_limit = int(min(vmem_cap * 0.8, max(need, 32 << 20)))

    grid = (B, n_row_tiles)
    pad_spec = pl.BlockSpec((C, 1, H_p, W_p), lambda b, r: (0, b, 0, 0))
    out_spec = pl.BlockSpec((C, 1, H_t, W), lambda b, r: (0, b, r, 0))
    out_shape = jax.ShapeDtypeStruct((C, B, H_eff, W), x.dtype)
    cparams = pltpu.CompilerParams(
        dimension_semantics=("parallel", "parallel"),
        vmem_limit_bytes=vmem_limit,
    )

    if uniform:
        kern = functools.partial(_uniform_blur_kernel, l=l, n_row_tiles=n_row_tiles)
        k_flat = jnp.asarray(kernel, jnp.float32).reshape(l * l)   # 1-D: minimal SMEM pad
        out_g = pl.pallas_call(
            kern,
            out_shape=out_shape,
            grid=grid,
            in_specs=[
                pl.BlockSpec(memory_space=pltpu.MemorySpace.SMEM),  # tiny (l*l,) kernel
                pad_spec,
            ],
            out_specs=out_spec,
            compiler_params=cparams,
        )(k_flat, pad_g)
    else:
        w_spec = pl.BlockSpec((1, l * l, H_t, W), lambda b, r: (b, 0, r, 0))
        kern = functools.partial(_sv_blur_kernel, l=l, n_row_tiles=n_row_tiles)
        out_g = pl.pallas_call(
            kern,
            out_shape=out_shape,
            grid=grid,
            in_specs=[pad_spec, w_spec],
            out_specs=out_spec,
            compiler_params=cparams,
        )(pad_g, w)

    if H_eff > H:
        out_g = out_g[:, :, :H, :]
    # Un-group: (C, B, H, W) flattens to flat index n = j*B + kb, exactly the original
    # image index n = b*C + c, so a plain reshape restores (B, C, H, W).
    return out_g.reshape(B, C, H, W)


# ---------------------------------------------------------------------------
# Plain-JAX reference with identical semantics (validation only)
# ---------------------------------------------------------------------------

def _reference(x, kernel, l, padmode="reflection"):
    B, C, H, W = x.shape
    padded = _pad_like_torch(x, l, padmode)
    padded = padded.reshape(B * C, *padded.shape[-2:])
    if kernel.ndim == 2:
        w = jnp.broadcast_to(kernel.reshape(1, l * l, 1, 1), (B * C, l * l, H, W))
    else:
        kw = kernel.reshape(B, H, W, l, l)[jnp.arange(B * C) % B]
        w = jnp.transpose(kw, (0, 3, 4, 1, 2)).reshape(B * C, l * l, H, W)
    out = jnp.zeros((B * C, H, W), jnp.float32)
    for i in range(l):
        for j in range(l):
            out = out + padded[:, i:i + H, j:j + W] * w[:, i * l + j]
    return out.reshape(B, C, H, W)


if __name__ == "__main__":
    key = jax.random.PRNGKey(0)
    kx, kk, kk2, kk3, kk4, kx2 = jax.random.split(key, 6)

    # --- 1) spatially-variant branch, default bf16 weight streaming ---
    B, C, H, W, L = 2, 3, 16, 16, 5        # C must be 3 for the SV branch
    x = jax.random.normal(kx, (B, C, H, W), dtype=jnp.float32)
    raw = jax.random.uniform(kk, (B, H * W, L, L), dtype=jnp.float32)
    sv_kernel = raw / jnp.sum(raw, axis=(-2, -1), keepdims=True)
    out = batch_blur_sv(x, sv_kernel, l=L, padmode="reflection")
    jax.block_until_ready(out)
    ref = _reference(x, sv_kernel, L, padmode="reflection")
    assert out.shape == (B, C, H, W)
    assert jnp.allclose(out, ref, atol=1e-2, rtol=1e-2), "mismatch (SV, bf16 weights)"

    # --- 2) same, exact f32 weight stream (bit-faithful semantics check) ---
    out_f32 = batch_blur_sv(x, sv_kernel, l=L, padmode="reflection",
                            weight_dtype=jnp.float32)
    jax.block_until_ready(out_f32)
    assert jnp.allclose(out_f32, ref, atol=1e-5, rtol=1e-5), "mismatch (SV, f32 weights)"

    # --- 3) spatially-uniform (2-D kernel) branch via SMEM scalars (any C) ---
    xu = jax.random.normal(kx2, (2, 4, 16, 16), dtype=jnp.float32)
    uk = jnp.ones((L, L), jnp.float32) / (L * L)
    out_u = batch_blur_sv(xu, uk, l=L, padmode="reflection")
    jax.block_until_ready(out_u)
    ref_u = _reference(xu, uk, L, padmode="reflection")
    assert jnp.allclose(out_u, ref_u, atol=1e-5, rtol=1e-5), "mismatch (uniform)"

    # --- 4) multi-row-tile path (dynamic row offset), bf16 weights ---
    H2 = 32
    x2 = jax.random.normal(kk2, (B, C, H2, W), dtype=jnp.float32)
    raw2 = jax.random.uniform(kk2, (B, H2 * W, L, L), dtype=jnp.float32)
    svk2 = raw2 / jnp.sum(raw2, axis=(-2, -1), keepdims=True)
    out2 = batch_blur_sv(x2, svk2, l=L, padmode="replication", row_tile=16)
    jax.block_until_ready(out2)
    ref2 = _reference(x2, svk2, L, padmode="replication")
    assert jnp.allclose(out2, ref2, atol=1e-2, rtol=1e-2), "mismatch (row-tiled)"

    # --- 5) large-l fori_loop path (module default l=19 uses this) ---
    L3 = 9
    raw3 = jax.random.uniform(kk3, (B, H * W, L3, L3), dtype=jnp.float32)
    svk3 = raw3 / jnp.sum(raw3, axis=(-2, -1), keepdims=True)
    out3 = batch_blur_sv(x, svk3, l=L3, padmode="zero")
    jax.block_until_ready(out3)
    ref3 = _reference(x, svk3, L3, padmode="zero")
    assert jnp.allclose(out3, ref3, atol=1e-2, rtol=1e-2), "mismatch (large l)"

    # --- 6) H not a multiple of the tile: padded row tiles + final slice ---
    H3 = 24
    x3 = jax.random.normal(kk4, (B, C, H3, W), dtype=jnp.float32)
    raw4 = jax.random.uniform(kk4, (B, H3 * W, L, L), dtype=jnp.float32)
    svk4 = raw4 / jnp.sum(raw4, axis=(-2, -1), keepdims=True)
    out4 = batch_blur_sv(x3, svk4, l=L, padmode="zero", row_tile=16,
                         weight_dtype=jnp.float32)
    jax.block_until_ready(out4)
    ref4 = _reference(x3, svk4, L, padmode="zero")
    assert jnp.allclose(out4, ref4, atol=1e-5, rtol=1e-5), "mismatch (padded rows)"

    print("KERNEL_OK")
</pallas_src>

<mosaic_0001>
module attributes {stable_mosaic.version = 11 : i64} {
  func.func @_sv_blur_kernel(%arg0: i32, %arg1: i32, %arg2: memref<3x1x20x20xf32, #tpu.memory_space<vmem>>, %arg3: memref<1x25x16x16xbf16, #tpu.memory_space<vmem>>, %arg4: memref<3x1x16x16xf32, #tpu.memory_space<vmem>>) attributes {dimension_semantics = [#tpu.dimension_semantics<parallel>, #tpu.dimension_semantics<parallel>], iteration_bounds = array<i64: 2, 1>, scalar_prefetch = 0 : i64, scratch_operands = 0 : i64, tpu.core_type = #tpu.core_type<tc>, window_params = [{transform_indices = @transform_0, window_bounds = array<i64: 3, 1, 20, 20>}, {transform_indices = @transform_1, window_bounds = array<i64: 1, 25, 16, 16>}, {transform_indices = @transform_2, window_bounds = array<i64: 3, 1, 16, 16>}]} {
    %cst = arith.constant 0.000000e+00 : f32
    %0 = vector.broadcast %cst : f32 to vector<16x16xf32>
    %cst_0 = arith.constant 0.000000e+00 : f32
    %1 = vector.broadcast %cst_0 : f32 to vector<16x16xf32>
    %cst_1 = arith.constant 0.000000e+00 : f32
    %2 = vector.broadcast %cst_1 : f32 to vector<16x16xf32>
    %c0 = arith.constant 0 : index
    %c0_2 = arith.constant 0 : index
    %c0_3 = arith.constant 0 : index
    %c0_4 = arith.constant 0 : index
    %3 = vector.load %arg3[%c0, %c0_2, %c0_3, %c0_4] : memref<1x25x16x16xbf16, #tpu.memory_space<vmem>>, vector<1x1x16x16xbf16>
    %4 = vector.shape_cast %3 : vector<1x1x16x16xbf16> to vector<16x16xbf16>
    %5 = arith.extf %4 : vector<16x16xbf16> to vector<16x16xf32>
    %c0_5 = arith.constant 0 : index
    %c0_6 = arith.constant 0 : index
    %c0_7 = arith.constant 0 : index
    %c0_8 = arith.constant 0 : index
    %6 = vector.load %arg2[%c0_5, %c0_6, %c0_7, %c0_8] : memref<3x1x20x20xf32, #tpu.memory_space<vmem>>, vector<1x1x16x16xf32>
    %7 = vector.shape_cast %6 : vector<1x1x16x16xf32> to vector<16x16xf32>
    %8 = arith.mulf %7, %5 : vector<16x16xf32>
    %9 = arith.addf %0, %8 : vector<16x16xf32>
    %c1 = arith.constant 1 : index
    %c0_9 = arith.constant 0 : index
    %c0_10 = arith.constant 0 : index
    %c0_11 = arith.constant 0 : index
    %10 = vector.load %arg2[%c1, %c0_9, %c0_10, %c0_11] : memref<3x1x20x20xf32, #tpu.memory_space<vmem>>, vector<1x1x16x16xf32>
    %11 = vector.shape_cast %10 : vector<1x1x16x16xf32> to vector<16x16xf32>
    %12 = arith.mulf %11, %5 : vector<16x16xf32>
    %13 = arith.addf %1, %12 : vector<16x16xf32>
    %c2 = arith.constant 2 : index
    %c0_12 = arith.constant 0 : index
    %c0_13 = arith.constant 0 : index
    %c0_14 = arith.constant 0 : index
    %14 = vector.load %arg2[%c2, %c0_12, %c0_13, %c0_14] : memref<3x1x20x20xf32, #tpu.memory_space<vmem>>, vector<1x1x16x16xf32>
    %15 = vector.shape_cast %14 : vector<1x1x16x16xf32> to vector<16x16xf32>
    %16 = arith.mulf %15, %5 : vector<16x16xf32>
    %17 = arith.addf %2, %16 : vector<16x16xf32>
    %c0_15 = arith.constant 0 : index
    %c1_16 = arith.constant 1 : index
    %c0_17 = arith.constant 0 : index
    %c0_18 = arith.constant 0 : index
    %18 = vector.load %arg3[%c0_15, %c1_16, %c0_17, %c0_18] : memref<1x25x16x16xbf16, #tpu.memory_space<vmem>>, vector<1x1x16x16xbf16>
    %19 = vector.shape_cast %18 : vector<1x1x16x16xbf16> to vector<16x16xbf16>
    %20 = arith.extf %19 : vector<16x16xbf16> to vector<16x16xf32>
    %c0_19 = arith.constant 0 : index
    %c0_20 = arith.constant 0 : index
    %c0_21 = arith.constant 0 : index
    %c1_22 = arith.constant 1 : index
    %21 = vector.load %arg2[%c0_19, %c0_20, %c0_21, %c1_22] : memref<3x1x20x20xf32, #tpu.memory_space<vmem>>, vector<1x1x16x16xf32>
    %22 = vector.shape_cast %21 : vector<1x1x16x16xf32> to vector<16x16xf32>
    %23 = arith.mulf %22, %20 : vector<16x16xf32>
    %24 = arith.addf %9, %23 : vector<16x16xf32>
    %c1_23 = arith.constant 1 : index
    %c0_24 = arith.constant 0 : index
    %c0_25 = arith.constant 0 : index
    %c1_26 = arith.constant 1 : index
    %25 = vector.load %arg2[%c1_23, %c0_24, %c0_25, %c1_26] : memref<3x1x20x20xf32, #tpu.memory_space<vmem>>, vector<1x1x16x16xf32>
    %26 = vector.shape_cast %25 : vector<1x1x16x16xf32> to vector<16x16xf32>
    %27 = arith.mulf %26, %20 : vector<16x16xf32>
    %28 = arith.addf %13, %27 : vector<16x16xf32>
    %c2_27 = arith.constant 2 : index
    %c0_28 = arith.constant 0 : index
    %c0_29 = arith.constant 0 : index
    %c1_30 = arith.constant 1 : index
    %29 = vector.load %arg2[%c2_27, %c0_28, %c0_29, %c1_30] : memref<3x1x20x20xf32, #tpu.memory_space<vmem>>, vector<1x1x16x16xf32>
    %30 = vector.shape_cast %29 : vector<1x1x16x16xf32> to vector<16x16xf32>
    %31 = arith.mulf %30, %20 : vector<16x16xf32>
    %32 = arith.addf %17, %31 : vector<16x16xf32>
    %c0_31 = arith.constant 0 : index
    %c2_32 = arith.constant 2 : index
    %c0_33 = arith.constant 0 : index
    %c0_34 = arith.constant 0 : index
    %33 = vector.load %arg3[%c0_31, %c2_32, %c0_33, %c0_34] : memref<1x25x16x16xbf16, #tpu.memory_space<vmem>>, vector<1x1x16x16xbf16>
    %34 = vector.shape_cast %33 : vector<1x1x16x16xbf16> to vector<16x16xbf16>
    %35 = arith.extf %34 : vector<16x16xbf16> to vector<16x16xf32>
    %c0_35 = arith.constant 0 : index
    %c0_36 = arith.constant 0 : index
    %c0_37 = arith.constant 0 : index
    %c2_38 = arith.constant 2 : index
    %36 = vector.load %arg2[%c0_35, %c0_36, %c0_37, %c2_38] : memref<3x1x20x20xf32, #tpu.memory_space<vmem>>, vector<1x1x16x16xf32>
    %37 = vector.shape_cast %36 : vector<1x1x16x16xf32> to vector<16x16xf32>
    %38 = arith.mulf %37, %35 : vector<16x16xf32>
    %39 = arith.addf %24, %38 : vector<16x16xf32>
    %c1_39 = arith.constant 1 : index
    %c0_40 = arith.constant 0 : index
    %c0_41 = arith.constant 0 : index
    %c2_42 = arith.constant 2 : index
    %40 = vector.load %arg2[%c1_39, %c0_40, %c0_41, %c2_42] : memref<3x1x20x20xf32, #tpu.memory_space<vmem>>, vector<1x1x16x16xf32>
    %41 = vector.shape_cast %40 : vector<1x1x16x16xf32> to vector<16x16xf32>
    %42 = arith.mulf %41, %35 : vector<16x16xf32>
    %43 = arith.addf %28, %42 : vector<16x16xf32>
    %c2_43 = arith.constant 2 : index
    %c0_44 = arith.constant 0 : index
    %c0_45 = arith.constant 0 : index
    %c2_46 = arith.constant 2 : index
    %44 = vector.load %arg2[%c2_43, %c0_44, %c0_45, %c2_46] : memref<3x1x20x20xf32, #tpu.memory_space<vmem>>, vector<1x1x16x16xf32>
    %45 = vector.shape_cast %44 : vector<1x1x16x16xf32> to vector<16x16xf32>
    %46 = arith.mulf %45, %35 : vector<16x16xf32>
    %47 = arith.addf %32, %46 : vector<16x16xf32>
    %c0_47 = arith.constant 0 : index
    %c3 = arith.constant 3 : index
    %c0_48 = arith.constant 0 : index
    %c0_49 = arith.constant 0 : index
    %48 = vector.load %arg3[%c0_47, %c3, %c0_48, %c0_49] : memref<1x25x16x16xbf16, #tpu.memory_space<vmem>>, vector<1x1x16x16xbf16>
    %49 = vector.shape_cast %48 : vector<1x1x16x16xbf16> to vector<16x16xbf16>
    %50 = arith.extf %49 : vector<16x16xbf16> to vector<16x16xf32>
    %c0_50 = arith.constant 0 : index
    %c0_51 = arith.constant 0 : index
    %c0_52 = arith.constant 0 : index
    %c3_53 = arith.constant 3 : index
    %51 = vector.load %arg2[%c0_50, %c0_51, %c0_52, %c3_53] : memref<3x1x20x20xf32, #tpu.memory_space<vmem>>, vector<1x1x16x16xf32>
    %52 = vector.shape_cast %51 : vector<1x1x16x16xf32> to vector<16x16xf32>
    %53 = arith.mulf %52, %50 : vector<16x16xf32>
    %54 = arith.addf %39, %53 : vector<16x16xf32>
    %c1_54 = arith.constant 1 : index
    %c0_55 = arith.constant 0 : index
    %c0_56 = arith.constant 0 : index
    %c3_57 = arith.constant 3 : index
    %55 = vector.load %arg2[%c1_54, %c0_55, %c0_56, %c3_57] : memref<3x1x20x20xf32, #tpu.memory_space<vmem>>, vector<1x1x16x16xf32>
    %56 = vector.shape_cast %55 : vector<1x1x16x16xf32> to vector<16x16xf32>
    %57 = arith.mulf %56, %50 : vector<16x16xf32>
    %58 = arith.addf %43, %57 : vector<16x16xf32>
    %c2_58 = arith.constant 2 : index
    %c0_59 = arith.constant 0 : index
    %c0_60 = arith.constant 0 : index
    %c3_61 = arith.constant 3 : index
    %59 = vector.load %arg2[%c2_58, %c0_59, %c0_60, %c3_61] : memref<3x1x20x20xf32, #tpu.memory_space<vmem>>, vector<1x1x16x16xf32>
    %60 = vector.shape_cast %59 : vector<1x1x16x16xf32> to vector<16x16xf32>
    %61 = arith.mulf %60, %50 : vector<16x16xf32>
    %62 = arith.addf %47, %61 : vector<16x16xf32>
    %c0_62 = arith.constant 0 : index
    %c4 = arith.constant 4 : index
    %c0_63 = arith.constant 0 : index
    %c0_64 = arith.constant 0 : index
    %63 = vector.load %arg3[%c0_62, %c4, %c0_63, %c0_64] : memref<1x25x16x16xbf16, #tpu.memory_space<vmem>>, vector<1x1x16x16xbf16>
    %64 = vector.shape_cast %63 : vector<1x1x16x16xbf16> to vector<16x16xbf16>
    %65 = arith.extf %64 : vector<16x16xbf16> to vector<16x16xf32>
    %c0_65 = arith.constant 0 : index
    %c0_66 = arith.constant 0 : index
    %c0_67 = arith.constant 0 : index
    %c4_68 = arith.constant 4 : index
    %66 = vector.load %arg2[%c0_65, %c0_66, %c0_67, %c4_68] : memref<3x1x20x20xf32, #tpu.memory_space<vmem>>, vector<1x1x16x16xf32>
    %67 = vector.shape_cast %66 : vector<1x1x16x16xf32> to vector<16x16xf32>
    %68 = arith.mulf %67, %65 : vector<16x16xf32>
    %69 = arith.addf %54, %68 : vector<16x16xf32>
    %c1_69 = arith.constant 1 : index
    %c0_70 = arith.constant 0 : index
    %c0_71 = arith.constant 0 : index
    %c4_72 = arith.constant 4 : index
    %70 = vector.load %arg2[%c1_69, %c0_70, %c0_71, %c4_72] : memref<3x1x20x20xf32, #tpu.memory_space<vmem>>, vector<1x1x16x16xf32>
    %71 = vector.shape_cast %70 : vector<1x1x16x16xf32> to vector<16x16xf32>
    %72 = arith.mulf %71, %65 : vector<16x16xf32>
    %73 = arith.addf %58, %72 : vector<16x16xf32>
    %c2_73 = arith.constant 2 : index
    %c0_74 = arith.constant 0 : index
    %c0_75 = arith.constant 0 : index
    %c4_76 = arith.constant 4 : index
    %74 = vector.load %arg2[%c2_73, %c0_74, %c0_75, %c4_76] : memref<3x1x20x20xf32, #tpu.memory_space<vmem>>, vector<1x1x16x16xf32>
    %75 = vector.shape_cast %74 : vector<1x1x16x16xf32> to vector<16x16xf32>
    %76 = arith.mulf %75, %65 : vector<16x16xf32>
    %77 = arith.addf %62, %76 : vector<16x16xf32>
    %c0_77 = arith.constant 0 : index
    %c5 = arith.constant 5 : index
    %c0_78 = arith.constant 0 : index
    %c0_79 = arith.constant 0 : index
    %78 = vector.load %arg3[%c0_77, %c5, %c0_78, %c0_79] : memref<1x25x16x16xbf16, #tpu.memory_space<vmem>>, vector<1x1x16x16xbf16>
    %79 = vector.shape_cast %78 : vector<1x1x16x16xbf16> to vector<16x16xbf16>
    %80 = arith.extf %79 : vector<16x16xbf16> to vector<16x16xf32>
    %c0_80 = arith.constant 0 : index
    %c0_81 = arith.constant 0 : index
    %c1_82 = arith.constant 1 : index
    %c0_83 = arith.constant 0 : index
    %81 = vector.load %arg2[%c0_80, %c0_81, %c1_82, %c0_83] : memref<3x1x20x20xf32, #tpu.memory_space<vmem>>, vector<1x1x16x16xf32>
    %82 = vector.shape_cast %81 : vector<1x1x16x16xf32> to vector<16x16xf32>
    %83 = arith.mulf %82, %80 : vector<16x16xf32>
    %84 = arith.addf %69, %83 : vector<16x16xf32>
    %c1_84 = arith.constant 1 : index
    %c0_85 = arith.constant 0 : index
    %c1_86 = arith.constant 1 : index
    %c0_87 = arith.constant 0 : index
    %85 = vector.load %arg2[%c1_84, %c0_85, %c1_86, %c0_87] : memref<3x1x20x20xf32, #tpu.memory_space<vmem>>, vector<1x1x16x16xf32>
    %86 = vector.shape_cast %85 : vector<1x1x16x16xf32> to vector<16x16xf32>
    %87 = arith.mulf %86, %80 : vector<16x16xf32>
    %88 = arith.addf %73, %87 : vector<16x16xf32>
    %c2_88 = arith.constant 2 : index
    %c0_89 = arith.constant 0 : index
    %c1_90 = arith.constant 1 : index
    %c0_91 = arith.constant 0 : index
    %89 = vector.load %arg2[%c2_88, %c0_89, %c1_90, %c0_91] : memref<3x1x20x20xf32, #tpu.memory_space<vmem>>, vector<1x1x16x16xf32>
    %90 = vector.shape_cast %89 : vector<1x1x16x16xf32> to vector<16x16xf32>
    %91 = arith.mulf %90, %80 : vector<16x16xf32>
    %92 = arith.addf %77, %91 : vector<16x16xf32>
    %c0_92 = arith.constant 0 : index
    %c6 = arith.constant 6 : index
    %c0_93 = arith.constant 0 : index
    %c0_94 = arith.constant 0 : index
    %93 = vector.load %arg3[%c0_92, %c6, %c0_93, %c0_94] : memref<1x25x16x16xbf16, #tpu.memory_space<vmem>>, vector<1x1x16x16xbf16>
    %94 = vector.shape_cast %93 : vector<1x1x16x16xbf16> to vector<16x16xbf16>
    %95 = arith.extf %94 : vector<16x16xbf16> to vector<16x16xf32>
    %c0_95 = arith.constant 0 : index
    %c0_96 = arith.constant 0 : index
    %c1_97 = arith.constant 1 : index
    %c1_98 = arith.constant 1 : index
    %96 = vector.load %arg2[%c0_95, %c0_96, %c1_97, %c1_98] : memref<3x1x20x20xf32, #tpu.memory_space<vmem>>, vector<1x1x16x16xf32>
    %97 = vector.shape_cast %96 : vector<1x1x16x16xf32> to vector<16x16xf32>
    %98 = arith.mulf %97, %95 : vector<16x16xf32>
    %99 = arith.addf %84, %98 : vector<16x16xf32>
    %c1_99 = arith.constant 1 : index
    %c0_100 = arith.constant 0 : index
    %c1_101 = arith.constant 1 : index
    %c1_102 = arith.constant 1 : index
    %100 = vector.load %arg2[%c1_99, %c0_100, %c1_101, %c1_102] : memref<3x1x20x20xf32, #tpu.memory_space<vmem>>, vector<1x1x16x16xf32>
    %101 = vector.shape_cast %100 : vector<1x1x16x16xf32> to vector<16x16xf32>
    %102 = arith.mulf %101, %95 : vector<16x16xf32>
    %103 = arith.addf %88, %102 : vector<16x16xf32>
    %c2_103 = arith.constant 2 : index
    %c0_104 = arith.constant 0 : index
    %c1_105 = arith.constant 1 : index
    %c1_106 = arith.constant 1 : index
    %104 = vector.load %arg2[%c2_103, %c0_104, %c1_105, %c1_106] : memref<3x1x20x20xf32, #tpu.memory_space<vmem>>, vector<1x1x16x16xf32>
    %105 = vector.shape_cast %104 : vector<1x1x16x16xf32> to vector<16x16xf32>
    %106 = arith.mulf %105, %95 : vector<16x16xf32>
    %107 = arith.addf %92, %106 : vector<16x16xf32>
    %c0_107 = arith.constant 0 : index
    %c7 = arith.constant 7 : index
    %c0_108 = arith.constant 0 : index
    %c0_109 = arith.constant 0 : index
    %108 = vector.load %arg3[%c0_107, %c7, %c0_108, %c0_109] : memref<1x25x16x16xbf16, #tpu.memory_space<vmem>>, vector<1x1x16x16xbf16>
    %109 = vector.shape_cast %108 : vector<1x1x16x16xbf16> to vector<16x16xbf16>
    %110 = arith.extf %109 : vector<16x16xbf16> to vector<16x16xf32>
    %c0_110 = arith.constant 0 : index
    %c0_111 = arith.constant 0 : index
    %c1_112 = arith.constant 1 : index
    %c2_113 = arith.constant 2 : index
    %111 = vector.load %arg2[%c0_110, %c0_111, %c1_112, %c2_113] : memref<3x1x20x20xf32, #tpu.memory_space<vmem>>, vector<1x1x16x16xf32>
    %112 = vector.shape_cast %111 : vector<1x1x16x16xf32> to vector<16x16xf32>
    %113 = arith.mulf %112, %110 : vector<16x16xf32>
    %114 = arith.addf %99, %113 : vector<16x16xf32>
    %c1_114 = arith.constant 1 : index
    %c0_115 = arith.constant 0 : index
    %c1_116 = arith.constant 1 : index
    %c2_117 = arith.constant 2 : index
    %115 = vector.load %arg2[%c1_114, %c0_115, %c1_116, %c2_117] : memref<3x1x20x20xf32, #tpu.memory_space<vmem>>, vector<1x1x16x16xf32>
    %116 = vector.shape_cast %115 : vector<1x1x16x16xf32> to vector<16x16xf32>
    %117 = arith.mulf %116, %110 : vector<16x16xf32>
    %118 = arith.addf %103, %117 : vector<16x16xf32>
    %c2_118 = arith.constant 2 : index
    %c0_119 = arith.constant 0 : index
    %c1_120 = arith.constant 1 : index
    %c2_121 = arith.constant 2 : index
    %119 = vector.load %arg2[%c2_118, %c0_119, %c1_120, %c2_121] : memref<3x1x20x20xf32, #tpu.memory_space<vmem>>, vector<1x1x16x16xf32>
    %120 = vector.shape_cast %119 : vector<1x1x16x16xf32> to vector<16x16xf32>
    %121 = arith.mulf %120, %110 : vector<16x16xf32>
    %122 = arith.addf %107, %121 : vector<16x16xf32>
    %c0_122 = arith.constant 0 : index
    %c8 = arith.constant 8 : index
    %c0_123 = arith.constant 0 : index
    %c0_124 = arith.constant 0 : index
    %123 = vector.load %arg3[%c0_122, %c8, %c0_123, %c0_124] : memref<1x25x16x16xbf16, #tpu.memory_space<vmem>>, vector<1x1x16x16xbf16>
    %124 = vector.shape_cast %123 : vector<1x1x16x16xbf16> to vector<16x16xbf16>
    %125 = arith.extf %124 : vector<16x16xbf16> to vector<16x16xf32>
    %c0_125 = arith.constant 0 : index
    %c0_126 = arith.constant 0 : index
    %c1_127 = arith.constant 1 : index
    %c3_128 = arith.constant 3 : index
    %126 = vector.load %arg2[%c0_125, %c0_126, %c1_127, %c3_128] : memref<3x1x20x20xf32, #tpu.memory_space<vmem>>, vector<1x1x16x16xf32>
    %127 = vector.shape_cast %126 : vector<1x1x16x16xf32> to vector<16x16xf32>
    %128 = arith.mulf %127, %125 : vector<16x16xf32>
    %129 = arith.addf %114, %128 : vector<16x16xf32>
    %c1_129 = arith.constant 1 : index
    %c0_130 = arith.constant 0 : index
    %c1_131 = arith.constant 1 : index
    %c3_132 = arith.constant 3 : index
    %130 = vector.load %arg2[%c1_129, %c0_130, %c1_131, %c3_132] : memref<3x1x20x20xf32, #tpu.memory_space<vmem>>, vector<1x1x16x16xf32>
    %131 = vector.shape_cast %130 : vector<1x1x16x16xf32> to vector<16x16xf32>
    %132 = arith.mulf %131, %125 : vector<16x16xf32>
    %133 = arith.addf %118, %132 : vector<16x16xf32>
    %c2_133 = arith.constant 2 : index
    %c0_134 = arith.constant 0 : index
    %c1_135 = arith.constant 1 : index
    %c3_136 = arith.constant 3 : index
    %134 = vector.load %arg2[%c2_133, %c0_134, %c1_135, %c3_136] : memref<3x1x20x20xf32, #tpu.memory_space<vmem>>, vector<1x1x16x16xf32>
    %135 = vector.shape_cast %134 : vector<1x1x16x16xf32> to vector<16x16xf32>
    %136 = arith.mulf %135, %125 : vector<16x16xf32>
    %137 = arith.addf %122, %136 : vector<16x16xf32>
    %c0_137 = arith.constant 0 : index
    %c9 = arith.constant 9 : index
    %c0_138 = arith.constant 0 : index
    %c0_139 = arith.constant 0 : index
    %138 = vector.load %arg3[%c0_137, %c9, %c0_138, %c0_139] : memref<1x25x16x16xbf16, #tpu.memory_space<vmem>>, vector<1x1x16x16xbf16>
    %139 = vector.shape_cast %138 : vector<1x1x16x16xbf16> to vector<16x16xbf16>
    %140 = arith.extf %139 : vector<16x16xbf16> to vector<16x16xf32>
    %c0_140 = arith.constant 0 : index
    %c0_141 = arith.constant 0 : index
    %c1_142 = arith.constant 1 : index
    %c4_143 = arith.constant 4 : index
    %141 = vector.load %arg2[%c0_140, %c0_141, %c1_142, %c4_143] : memref<3x1x20x20xf32, #tpu.memory_space<vmem>>, vector<1x1x16x16xf32>
    %142 = vector.shape_cast %141 : vector<1x1x16x16xf32> to vector<16x16xf32>
    %143 = arith.mulf %142, %140 : vector<16x16xf32>
    %144 = arith.addf %129, %143 : vector<16x16xf32>
    %c1_144 = arith.constant 1 : index
    %c0_145 = arith.constant 0 : index
    %c1_146 = arith.constant 1 : index
    %c4_147 = arith.constant 4 : index
    %145 = vector.load %arg2[%c1_144, %c0_145, %c1_146, %c4_147] : memref<3x1x20x20xf32, #tpu.memory_space<vmem>>, vector<1x1x16x16xf32>
    %146 = vector.shape_cast %145 : vector<1x1x16x16xf32> to vector<16x16xf32>
    %147 = arith.mulf %146, %140 : vector<16x16xf32>
    %148 = arith.addf %133, %147 : vector<16x16xf32>
    %c2_148 = arith.constant 2 : index
    %c0_149 = arith.constant 0 : index
    %c1_150 = arith.constant 1 : index
    %c4_151 = arith.constant 4 : index
    %149 = vector.load %arg2[%c2_148, %c0_149, %c1_150, %c4_151] : memref<3x1x20x20xf32, #tpu.memory_space<vmem>>, vector<1x1x16x16xf32>
    %150 = vector.shape_cast %149 : vector<1x1x16x16xf32> to vector<16x16xf32>
    %151 = arith.mulf %150, %140 : vector<16x16xf32>
    %152 = arith.addf %137, %151 : vector<16x16xf32>
    %c0_152 = arith.constant 0 : index
    %c10 = arith.constant 10 : index
    %c0_153 = arith.constant 0 : index
    %c0_154 = arith.constant 0 : index
    %153 = vector.load %arg3[%c0_152, %c10, %c0_153, %c0_154] : memref<1x25x16x16xbf16, #tpu.memory_space<vmem>>, vector<1x1x16x16xbf16>
    %154 = vector.shape_cast %153 : vector<1x1x16x16xbf16> to vector<16x16xbf16>
    %155 = arith.extf %154 : vector<16x16xbf16> to vector<16x16xf32>
    %c0_155 = arith.constant 0 : index
    %c0_156 = arith.constant 0 : index
    %c2_157 = arith.constant 2 : index
    %c0_158 = arith.constant 0 : index
    %156 = vector.load %arg2[%c0_155, %c0_156, %c2_157, %c0_158] : memref<3x1x20x20xf32, #tpu.memory_space<vmem>>, vector<1x1x16x16xf32>
    %157 = vector.shape_cast %156 : vector<1x1x16x16xf32> to vector<16x16xf32>
    %158 = arith.mulf %157, %155 : vector<16x16xf32>
    %159 = arith.addf %144, %158 : vector<16x16xf32>
    %c1_159 = arith.constant 1 : index
    %c0_160 = arith.constant 0 : index
    %c2_161 = arith.constant 2 : index
    %c0_162 = arith.constant 0 : index
    %160 = vector.load %arg2[%c1_159, %c0_160, %c2_161, %c0_162] : memref<3x1x20x20xf32, #tpu.memory_space<vmem>>, vector<1x1x16x16xf32>
    %161 = vector.shape_cast %160 : vector<1x1x16x16xf32> to vector<16x16xf32>
    %162 = arith.mulf %161, %155 : vector<16x16xf32>
    %163 = arith.addf %148, %162 : vector<16x16xf32>
    %c2_163 = arith.constant 2 : index
    %c0_164 = arith.constant 0 : index
    %c2_165 = arith.constant 2 : index
    %c0_166 = arith.constant 0 : index
    %164 = vector.load %arg2[%c2_163, %c0_164, %c2_165, %c0_166] : memref<3x1x20x20xf32, #tpu.memory_space<vmem>>, vector<1x1x16x16xf32>
    %165 = vector.shape_cast %164 : vector<1x1x16x16xf32> to vector<16x16xf32>
    %166 = arith.mulf %165, %155 : vector<16x16xf32>
    %167 = arith.addf %152, %166 : vector<16x16xf32>
    %c0_167 = arith.constant 0 : index
    %c11 = arith.constant 11 : index
    %c0_168 = arith.constant 0 : index
    %c0_169 = arith.constant 0 : index
    %168 = vector.load %arg3[%c0_167, %c11, %c0_168, %c0_169] : memref<1x25x16x16xbf16, #tpu.memory_space<vmem>>, vector<1x1x16x16xbf16>
    %169 = vector.shape_cast %168 : vector<1x1x16x16xbf16> to vector<16x16xbf16>
    %170 = arith.extf %169 : vector<16x16xbf16> to vector<16x16xf32>
    %c0_170 = arith.constant 0 : index
    %c0_171 = arith.constant 0 : index
    %c2_172 = arith.constant 2 : index
    %c1_173 = arith.constant 1 : index
    %171 = vector.load %arg2[%c0_170, %c0_171, %c2_172, %c1_173] : memref<3x1x20x20xf32, #tpu.memory_space<vmem>>, vector<1x1x16x16xf32>
    %172 = vector.shape_cast %171 : vector<1x1x16x16xf32> to vector<16x16xf32>
    %173 = arith.mulf %172, %170 : vector<16x16xf32>
    %174 = arith.addf %159, %173 : vector<16x16xf32>
    %c1_174 = arith.constant 1 : index
    %c0_175 = arith.constant 0 : index
    %c2_176 = arith.constant 2 : index
    %c1_177 = arith.constant 1 : index
    %175 = vector.load %arg2[%c1_174, %c0_175, %c2_176, %c1_177] : memref<3x1x20x20xf32, #tpu.memory_space<vmem>>, vector<1x1x16x16xf32>
    %176 = vector.shape_cast %175 : vector<1x1x16x16xf32> to vector<16x16xf32>
    %177 = arith.mulf %176, %170 : vector<16x16xf32>
    %178 = arith.addf %163, %177 : vector<16x16xf32>
    %c2_178 = arith.constant 2 : index
    %c0_179 = arith.constant 0 : index
    %c2_180 = arith.constant 2 : index
    %c1_181 = arith.constant 1 : index
    %179 = vector.load %arg2[%c2_178, %c0_179, %c2_180, %c1_181] : memref<3x1x20x20xf32, #tpu.memory_space<vmem>>, vector<1x1x16x16xf32>
    %180 = vector.shape_cast %179 : vector<1x1x16x16xf32> to vector<16x16xf32>
    %181 = arith.mulf %180, %170 : vector<16x16xf32>
    %182 = arith.addf %167, %181 : vector<16x16xf32>
    %c0_182 = arith.constant 0 : index
    %c12 = arith.constant 12 : index
    %c0_183 = arith.constant 0 : index
    %c0_184 = arith.constant 0 : index
    %183 = vector.load %arg3[%c0_182, %c12, %c0_183, %c0_184] : memref<1x25x16x16xbf16, #tpu.memory_space<vmem>>, vector<1x1x16x16xbf16>
    %184 = vector.shape_cast %183 : vector<1x1x16x16xbf16> to vector<16x16xbf16>
    %185 = arith.extf %184 : vector<16x16xbf16> to vector<16x16xf32>
    %c0_185 = arith.constant 0 : index
    %c0_186 = arith.constant 0 : index
    %c2_187 = arith.constant 2 : index
    %c2_188 = arith.constant 2 : index
    %186 = vector.load %arg2[%c0_185, %c0_186, %c2_187, %c2_188] : memref<3x1x20x20xf32, #tpu.memory_space<vmem>>, vector<1x1x16x16xf32>
    %187 = vector.shape_cast %186 : vector<1x1x16x16xf32> to vector<16x16xf32>
    %188 = arith.mulf %187, %185 : vector<16x16xf32>
    %189 = arith.addf %174, %188 : vector<16x16xf32>
    %c1_189 = arith.constant 1 : index
    %c0_190 = arith.constant 0 : index
    %c2_191 = arith.constant 2 : index
    %c2_192 = arith.constant 2 : index
    %190 = vector.load %arg2[%c1_189, %c0_190, %c2_191, %c2_192] : memref<3x1x20x20xf32, #tpu.memory_space<vmem>>, vector<1x1x16x16xf32>
    %191 = vector.shape_cast %190 : vector<1x1x16x16xf32> to vector<16x16xf32>
    %192 = arith.mulf %191, %185 : vector<16x16xf32>
    %193 = arith.addf %178, %192 : vector<16x16xf32>
    %c2_193 = arith.constant 2 : index
    %c0_194 = arith.constant 0 : index
    %c2_195 = arith.constant 2 : index
    %c2_196 = arith.constant 2 : index
    %194 = vector.load %arg2[%c2_193, %c0_194, %c2_195, %c2_196] : memref<3x1x20x20xf32, #tpu.memory_space<vmem>>, vector<1x1x16x16xf32>
    %195 = vector.shape_cast %194 : vector<1x1x16x16xf32> to vector<16x16xf32>
    %196 = arith.mulf %195, %185 : vector<16x16xf32>
    %197 = arith.addf %182, %196 : vector<16x16xf32>
    %c0_197 = arith.constant 0 : index
    %c13 = arith.constant 13 : index
    %c0_198 = arith.constant 0 : index
    %c0_199 = arith.constant 0 : index
    %198 = vector.load %arg3[%c0_197, %c13, %c0_198, %c0_199] : memref<1x25x16x16xbf16, #tpu.memory_space<vmem>>, vector<1x1x16x16xbf16>
    %199 = vector.shape_cast %198 : vector<1x1x16x16xbf16> to vector<16x16xbf16>
    %200 = arith.extf %199 : vector<16x16xbf16> to vector<16x16xf32>
    %c0_200 = arith.constant 0 : index
    %c0_201 = arith.constant 0 : index
    %c2_202 = arith.constant 2 : index
    %c3_203 = arith.constant 3 : index
    %201 = vector.load %arg2[%c0_200, %c0_201, %c2_202, %c3_203] : memref<3x1x20x20xf32, #tpu.memory_space<vmem>>, vector<1x1x16x16xf32>
    %202 = vector.shape_cast %201 : vector<1x1x16x16xf32> to vector<16x16xf32>
    %203 = arith.mulf %202, %200 : vector<16x16xf32>
    %204 = arith.addf %189, %203 : vector<16x16xf32>
    %c1_204 = arith.constant 1 : index
    %c0_205 = arith.constant 0 : index
    %c2_206 = arith.constant 2 : index
    %c3_207 = arith.constant 3 : index
    %205 = vector.load %arg2[%c1_204, %c0_205, %c2_206, %c3_207] : memref<3x1x20x20xf32, #tpu.memory_space<vmem>>, vector<1x1x16x16xf32>
    %206 = vector.shape_cast %205 : vector<1x1x16x16xf32> to vector<16x16xf32>
    %207 = arith.mulf %206, %200 : vector<16x16xf32>
    %208 = arith.addf %193, %207 : vector<16x16xf32>
    %c2_208 = arith.constant 2 : index
    %c0_209 = arith.constant 0 : index
    %c2_210 = arith.constant 2 : index
    %c3_211 = arith.constant 3 : index
    %209 = vector.load %arg2[%c2_208, %c0_209, %c2_210, %c3_211] : memref<3x1x20x20xf32, #tpu.memory_space<vmem>>, vector<1x1x16x16xf32>
    %210 = vector.shape_cast %209 : vector<1x1x16x16xf32> to vector<16x16xf32>
    %211 = arith.mulf %210, %200 : vector<16x16xf32>
    %212 = arith.addf %197, %211 : vector<16x16xf32>
    %c0_212 = arith.constant 0 : index
    %c14 = arith.constant 14 : index
    %c0_213 = arith.constant 0 : index
    %c0_214 = arith.constant 0 : index
    %213 = vector.load %arg3[%c0_212, %c14, %c0_213, %c0_214] : memref<1x25x16x16xbf16, #tpu.memory_space<vmem>>, vector<1x1x16x16xbf16>
    %214 = vector.shape_cast %213 : vector<1x1x16x16xbf16> to vector<16x16xbf16>
    %215 = arith.extf %214 : vector<16x16xbf16> to vector<16x16xf32>
    %c0_215 = arith.constant 0 : index
    %c0_216 = arith.constant 0 : index
    %c2_217 = arith.constant 2 : index
    %c4_218 = arith.constant 4 : index
    %216 = vector.load %arg2[%c0_215, %c0_216, %c2_217, %c4_218] : memref<3x1x20x20xf32, #tpu.memory_space<vmem>>, vector<1x1x16x16xf32>
    %217 = vector.shape_cast %216 : vector<1x1x16x16xf32> to vector<16x16xf32>
    %218 = arith.mulf %217, %215 : vector<16x16xf32>
    %219 = arith.addf %204, %218 : vector<16x16xf32>
    %c1_219 = arith.constant 1 : index
    %c0_220 = arith.constant 0 : index
    %c2_221 = arith.constant 2 : index
    %c4_222 = arith.constant 4 : index
    %220 = vector.load %arg2[%c1_219, %c0_220, %c2_221, %c4_222] : memref<3x1x20x20xf32, #tpu.memory_space<vmem>>, vector<1x1x16x16xf32>
    %221 = vector.shape_cast %220 : vector<1x1x16x16xf32> to vector<16x16xf32>
    %222 = arith.mulf %221, %215 : vector<16x16xf32>
    %223 = arith.addf %208, %222 : vector<16x16xf32>
    %c2_223 = arith.constant 2 : index
    %c0_224 = arith.constant 0 : index
    %c2_225 = arith.constant 2 : index
    %c4_226 = arith.constant 4 : index
    %224 = vector.load %arg2[%c2_223, %c0_224, %c2_225, %c4_226] : memref<3x1x20x20xf32, #tpu.memory_space<vmem>>, vector<1x1x16x16xf32>
    %225 = vector.shape_cast %224 : vector<1x1x16x16xf32> to vector<16x16xf32>
    %226 = arith.mulf %225, %215 : vector<16x16xf32>
    %227 = arith.addf %212, %226 : vector<16x16xf32>
    %c0_227 = arith.constant 0 : index
    %c15 = arith.constant 15 : index
    %c0_228 = arith.constant 0 : index
    %c0_229 = arith.constant 0 : index
    %228 = vector.load %arg3[%c0_227, %c15, %c0_228, %c0_229] : memref<1x25x16x16xbf16, #tpu.memory_space<vmem>>, vector<1x1x16x16xbf16>
    %229 = vector.shape_cast %228 : vector<1x1x16x16xbf16> to vector<16x16xbf16>
    %230 = arith.extf %229 : vector<16x16xbf16> to vector<16x16xf32>
    %c0_230 = arith.constant 0 : index
    %c0_231 = arith.constant 0 : index
    %c3_232 = arith.constant 3 : index
    %c0_233 = arith.constant 0 : index
    %231 = vector.load %arg2[%c0_230, %c0_231, %c3_232, %c0_233] : memref<3x1x20x20xf32, #tpu.memory_space<vmem>>, vector<1x1x16x16xf32>
    %232 = vector.shape_cast %231 : vector<1x1x16x16xf32> to vector<16x16xf32>
    %233 = arith.mulf %232, %230 : vector<16x16xf32>
    %234 = arith.addf %219, %233 : vector<16x16xf32>
    %c1_234 = arith.constant 1 : index
    %c0_235 = arith.constant 0 : index
    %c3_236 = arith.constant 3 : index
    %c0_237 = arith.constant 0 : index
    %235 = vector.load %arg2[%c1_234, %c0_235, %c3_236, %c0_237] : memref<3x1x20x20xf32, #tpu.memory_space<vmem>>, vector<1x1x16x16xf32>
    %236 = vector.shape_cast %235 : vector<1x1x16x16xf32> to vector<16x16xf32>
    %237 = arith.mulf %236, %230 : vector<16x16xf32>
    %238 = arith.addf %223, %237 : vector<16x16xf32>
    %c2_238 = arith.constant 2 : index
    %c0_239 = arith.constant 0 : index
    %c3_240 = arith.constant 3 : index
    %c0_241 = arith.constant 0 : index
    %239 = vector.load %arg2[%c2_238, %c0_239, %c3_240, %c0_241] : memref<3x1x20x20xf32, #tpu.memory_space<vmem>>, vector<1x1x16x16xf32>
    %240 = vector.shape_cast %239 : vector<1x1x16x16xf32> to vector<16x16xf32>
    %241 = arith.mulf %240, %230 : vector<16x16xf32>
    %242 = arith.addf %227, %241 : vector<16x16xf32>
    %c0_242 = arith.constant 0 : index
    %c16 = arith.constant 16 : index
    %c0_243 = arith.constant 0 : index
    %c0_244 = arith.constant 0 : index
    %243 = vector.load %arg3[%c0_242, %c16, %c0_243, %c0_244] : memref<1x25x16x16xbf16, #tpu.memory_space<vmem>>, vector<1x1x16x16xbf16>
    %244 = vector.shape_cast %243 : vector<1x1x16x16xbf16> to vector<16x16xbf16>
    %245 = arith.extf %244 : vector<16x16xbf16> to vector<16x16xf32>
    %c0_245 = arith.constant 0 : index
    %c0_246 = arith.constant 0 : index
    %c3_247 = arith.constant 3 : index
    %c1_248 = arith.constant 1 : index
    %246 = vector.load %arg2[%c0_245, %c0_246, %c3_247, %c1_248] : memref<3x1x20x20xf32, #tpu.memory_space<vmem>>, vector<1x1x16x16xf32>
    %247 = vector.shape_cast %246 : vector<1x1x16x16xf32> to vector<16x16xf32>
    %248 = arith.mulf %247, %245 : vector<16x16xf32>
    %249 = arith.addf %234, %248 : vector<16x16xf32>
    %c1_249 = arith.constant 1 : index
    %c0_250 = arith.constant 0 : index
    %c3_251 = arith.constant 3 : index
    %c1_252 = arith.constant 1 : index
    %250 = vector.load %arg2[%c1_249, %c0_250, %c3_251, %c1_252] : memref<3x1x20x20xf32, #tpu.memory_space<vmem>>, vector<1x1x16x16xf32>
    %251 = vector.shape_cast %250 : vector<1x1x16x16xf32> to vector<16x16xf32>
    %252 = arith.mulf %251, %245 : vector<16x16xf32>
    %253 = arith.addf %238, %252 : vector<16x16xf32>
    %c2_253 = arith.constant 2 : index
    %c0_254 = arith.constant 0 : index
    %c3_255 = arith.constant 3 : index
    %c1_256 = arith.constant 1 : index
    %254 = vector.load %arg2[%c2_253, %c0_254, %c3_255, %c1_256] : memref<3x1x20x20xf32, #tpu.memory_space<vmem>>, vector<1x1x16x16xf32>
    %255 = vector.shape_cast %254 : vector<1x1x16x16xf32> to vector<16x16xf32>
    %256 = arith.mulf %255, %245 : vector<16x16xf32>
    %257 = arith.addf %242, %256 : vector<16x16xf32>
    %c0_257 = arith.constant 0 : index
    %c17 = arith.constant 17 : index
    %c0_258 = arith.constant 0 : index
    %c0_259 = arith.constant 0 : index
    %258 = vector.load %arg3[%c0_257, %c17, %c0_258, %c0_259] : memref<1x25x16x16xbf16, #tpu.memory_space<vmem>>, vector<1x1x16x16xbf16>
    %259 = vector.shape_cast %258 : vector<1x1x16x16xbf16> to vector<16x16xbf16>
    %260 = arith.extf %259 : vector<16x16xbf16> to vector<16x16xf32>
    %c0_260 = arith.constant 0 : index
    %c0_261 = arith.constant 0 : index
    %c3_262 = arith.constant 3 : index
    %c2_263 = arith.constant 2 : index
    %261 = vector.load %arg2[%c0_260, %c0_261, %c3_262, %c2_263] : memref<3x1x20x20xf32, #tpu.memory_space<vmem>>, vector<1x1x16x16xf32>
    %262 = vector.shape_cast %261 : vector<1x1x16x16xf32> to vector<16x16xf32>
    %263 = arith.mulf %262, %260 : vector<16x16xf32>
    %264 = arith.addf %249, %263 : vector<16x16xf32>
    %c1_264 = arith.constant 1 : index
    %c0_265 = arith.constant 0 : index
    %c3_266 = arith.constant 3 : index
    %c2_267 = arith.constant 2 : index
    %265 = vector.load %arg2[%c1_264, %c0_265, %c3_266, %c2_267] : memref<3x1x20x20xf32, #tpu.memory_space<vmem>>, vector<1x1x16x16xf32>
    %266 = vector.shape_cast %265 : vector<1x1x16x16xf32> to vector<16x16xf32>
    %267 = arith.mulf %266, %260 : vector<16x16xf32>
    %268 = arith.addf %253, %267 : vector<16x16xf32>
    %c2_268 = arith.constant 2 : index
    %c0_269 = arith.constant 0 : index
    %c3_270 = arith.constant 3 : index
    %c2_271 = arith.constant 2 : index
    %269 = vector.load %arg2[%c2_268, %c0_269, %c3_270, %c2_271] : memref<3x1x20x20xf32, #tpu.memory_space<vmem>>, vector<1x1x16x16xf32>
    %270 = vector.shape_cast %269 : vector<1x1x16x16xf32> to vector<16x16xf32>
    %271 = arith.mulf %270, %260 : vector<16x16xf32>
    %272 = arith.addf %257, %271 : vector<16x16xf32>
    %c0_272 = arith.constant 0 : index
    %c18 = arith.constant 18 : index
    %c0_273 = arith.constant 0 : index
    %c0_274 = arith.constant 0 : index
    %273 = vector.load %arg3[%c0_272, %c18, %c0_273, %c0_274] : memref<1x25x16x16xbf16, #tpu.memory_space<vmem>>, vector<1x1x16x16xbf16>
    %274 = vector.shape_cast %273 : vector<1x1x16x16xbf16> to vector<16x16xbf16>
    %275 = arith.extf %274 : vector<16x16xbf16> to vector<16x16xf32>
    %c0_275 = arith.constant 0 : index
    %c0_276 = arith.constant 0 : index
    %c3_277 = arith.constant 3 : index
    %c3_278 = arith.constant 3 : index
    %276 = vector.load %arg2[%c0_275, %c0_276, %c3_277, %c3_278] : memref<3x1x20x20xf32, #tpu.memory_space<vmem>>, vector<1x1x16x16xf32>
    %277 = vector.shape_cast %276 : vector<1x1x16x16xf32> to vector<16x16xf32>
    %278 = arith.mulf %277, %275 : vector<16x16xf32>
    %279 = arith.addf %264, %278 : vector<16x16xf32>
    %c1_279 = arith.constant 1 : index
    %c0_280 = arith.constant 0 : index
    %c3_281 = arith.constant 3 : index
    %c3_282 = arith.constant 3 : index
    %280 = vector.load %arg2[%c1_279, %c0_280, %c3_281, %c3_282] : memref<3x1x20x20xf32, #tpu.memory_space<vmem>>, vector<1x1x16x16xf32>
    %281 = vector.shape_cast %280 : vector<1x1x16x16xf32> to vector<16x16xf32>
    %282 = arith.mulf %281, %275 : vector<16x16xf32>
    %283 = arith.addf %268, %282 : vector<16x16xf32>
    %c2_283 = arith.constant 2 : index
    %c0_284 = arith.constant 0 : index
    %c3_285 = arith.constant 3 : index
    %c3_286 = arith.constant 3 : index
    %284 = vector.load %arg2[%c2_283, %c0_284, %c3_285, %c3_286] : memref<3x1x20x20xf32, #tpu.memory_space<vmem>>, vector<1x1x16x16xf32>
    %285 = vector.shape_cast %284 : vector<1x1x16x16xf32> to vector<16x16xf32>
    %286 = arith.mulf %285, %275 : vector<16x16xf32>
    %287 = arith.addf %272, %286 : vector<16x16xf32>
    %c0_287 = arith.constant 0 : index
    %c19 = arith.constant 19 : index
    %c0_288 = arith.constant 0 : index
    %c0_289 = arith.constant 0 : index
    %288 = vector.load %arg3[%c0_287, %c19, %c0_288, %c0_289] : memref<1x25x16x16xbf16, #tpu.memory_space<vmem>>, vector<1x1x16x16xbf16>
    %289 = vector.shape_cast %288 : vector<1x1x16x16xbf16> to vector<16x16xbf16>
    %290 = arith.extf %289 : vector<16x16xbf16> to vector<16x16xf32>
    %c0_290 = arith.constant 0 : index
    %c0_291 = arith.constant 0 : index
    %c3_292 = arith.constant 3 : index
    %c4_293 = arith.constant 4 : index
    %291 = vector.load %arg2[%c0_290, %c0_291, %c3_292, %c4_293] : memref<3x1x20x20xf32, #tpu.memory_space<vmem>>, vector<1x1x16x16xf32>
    %292 = vector.shape_cast %291 : vector<1x1x16x16xf32> to vector<16x16xf32>
    %293 = arith.mulf %292, %290 : vector<16x16xf32>
    %294 = arith.addf %279, %293 : vector<16x16xf32>
    %c1_294 = arith.constant 1 : index
    %c0_295 = arith.constant 0 : index
    %c3_296 = arith.constant 3 : index
    %c4_297 = arith.constant 4 : index
    %295 = vector.load %arg2[%c1_294, %c0_295, %c3_296, %c4_297] : memref<3x1x20x20xf32, #tpu.memory_space<vmem>>, vector<1x1x16x16xf32>
    %296 = vector.shape_cast %295 : vector<1x1x16x16xf32> to vector<16x16xf32>
    %297 = arith.mulf %296, %290 : vector<16x16xf32>
    %298 = arith.addf %283, %297 : vector<16x16xf32>
    %c2_298 = arith.constant 2 : index
    %c0_299 = arith.constant 0 : index
    %c3_300 = arith.constant 3 : index
    %c4_301 = arith.constant 4 : index
    %299 = vector.load %arg2[%c2_298, %c0_299, %c3_300, %c4_301] : memref<3x1x20x20xf32, #tpu.memory_space<vmem>>, vector<1x1x16x16xf32>
    %300 = vector.shape_cast %299 : vector<1x1x16x16xf32> to vector<16x16xf32>
    %301 = arith.mulf %300, %290 : vector<16x16xf32>
    %302 = arith.addf %287, %301 : vector<16x16xf32>
    %c0_302 = arith.constant 0 : index
    %c20 = arith.constant 20 : index
    %c0_303 = arith.constant 0 : index
    %c0_304 = arith.constant 0 : index
    %303 = vector.load %arg3[%c0_302, %c20, %c0_303, %c0_304] : memref<1x25x16x16xbf16, #tpu.memory_space<vmem>>, vector<1x1x16x16xbf16>
    %304 = vector.shape_cast %303 : vector<1x1x16x16xbf16> to vector<16x16xbf16>
    %305 = arith.extf %304 : vector<16x16xbf16> to vector<16x16xf32>
    %c0_305 = arith.constant 0 : index
    %c0_306 = arith.constant 0 : index
    %c4_307 = arith.constant 4 : index
    %c0_308 = arith.constant 0 : index
    %306 = vector.load %arg2[%c0_305, %c0_306, %c4_307, %c0_308] : memref<3x1x20x20xf32, #tpu.memory_space<vmem>>, vector<1x1x16x16xf32>
    %307 = vector.shape_cast %306 : vector<1x1x16x16xf32> to vector<16x16xf32>
    %308 = arith.mulf %307, %305 : vector<16x16xf32>
    %309 = arith.addf %294, %308 : vector<16x16xf32>
    %c1_309 = arith.constant 1 : index
    %c0_310 = arith.constant 0 : index
    %c4_311 = arith.constant 4 : index
    %c0_312 = arith.constant 0 : index
    %310 = vector.load %arg2[%c1_309, %c0_310, %c4_311, %c0_312] : memref<3x1x20x20xf32, #tpu.memory_space<vmem>>, vector<1x1x16x16xf32>
    %311 = vector.shape_cast %310 : vector<1x1x16x16xf32> to vector<16x16xf32>
    %312 = arith.mulf %311, %305 : vector<16x16xf32>
    %313 = arith.addf %298, %312 : vector<16x16xf32>
    %c2_313 = arith.constant 2 : index
    %c0_314 = arith.constant 0 : index
    %c4_315 = arith.constant 4 : index
    %c0_316 = arith.constant 0 : index
    %314 = vector.load %arg2[%c2_313, %c0_314, %c4_315, %c0_316] : memref<3x1x20x20xf32, #tpu.memory_space<vmem>>, vector<1x1x16x16xf32>
    %315 = vector.shape_cast %314 : vector<1x1x16x16xf32> to vector<16x16xf32>
    %316 = arith.mulf %315, %305 : vector<16x16xf32>
    %317 = arith.addf %302, %316 : vector<16x16xf32>
    %c0_317 = arith.constant 0 : index
    %c21 = arith.constant 21 : index
    %c0_318 = arith.constant 0 : index
    %c0_319 = arith.constant 0 : index
    %318 = vector.load %arg3[%c0_317, %c21, %c0_318, %c0_319] : memref<1x25x16x16xbf16, #tpu.memory_space<vmem>>, vector<1x1x16x16xbf16>
    %319 = vector.shape_cast %318 : vector<1x1x16x16xbf16> to vector<16x16xbf16>
    %320 = arith.extf %319 : vector<16x16xbf16> to vector<16x16xf32>
    %c0_320 = arith.constant 0 : index
    %c0_321 = arith.constant 0 : index
    %c4_322 = arith.constant 4 : index
    %c1_323 = arith.constant 1 : index
    %321 = vector.load %arg2[%c0_320, %c0_321, %c4_322, %c1_323] : memref<3x1x20x20xf32, #tpu.memory_space<vmem>>, vector<1x1x16x16xf32>
    %322 = vector.shape_cast %321 : vector<1x1x16x16xf32> to vector<16x16xf32>
    %323 = arith.mulf %322, %320 : vector<16x16xf32>
    %324 = arith.addf %309, %323 : vector<16x16xf32>
    %c1_324 = arith.constant 1 : index
    %c0_325 = arith.constant 0 : index
    %c4_326 = arith.constant 4 : index
    %c1_327 = arith.constant 1 : index
    %325 = vector.load %arg2[%c1_324, %c0_325, %c4_326, %c1_327] : memref<3x1x20x20xf32, #tpu.memory_space<vmem>>, vector<1x1x16x16xf32>
    %326 = vector.shape_cast %325 : vector<1x1x16x16xf32> to vector<16x16xf32>
    %327 = arith.mulf %326, %320 : vector<16x16xf32>
    %328 = arith.addf %313, %327 : vector<16x16xf32>
    %c2_328 = arith.constant 2 : index
    %c0_329 = arith.constant 0 : index
    %c4_330 = arith.constant 4 : index
    %c1_331 = arith.constant 1 : index
    %329 = vector.load %arg2[%c2_328, %c0_329, %c4_330, %c1_331] : memref<3x1x20x20xf32, #tpu.memory_space<vmem>>, vector<1x1x16x16xf32>
    %330 = vector.shape_cast %329 : vector<1x1x16x16xf32> to vector<16x16xf32>
    %331 = arith.mulf %330, %320 : vector<16x16xf32>
    %332 = arith.addf %317, %331 : vector<16x16xf32>
    %c0_332 = arith.constant 0 : index
    %c22 = arith.constant 22 : index
    %c0_333 = arith.constant 0 : index
    %c0_334 = arith.constant 0 : index
    %333 = vector.load %arg3[%c0_332, %c22, %c0_333, %c0_334] : memref<1x25x16x16xbf16, #tpu.memory_space<vmem>>, vector<1x1x16x16xbf16>
    %334 = vector.shape_cast %333 : vector<1x1x16x16xbf16> to vector<16x16xbf16>
    %335 = arith.extf %334 : vector<16x16xbf16> to vector<16x16xf32>
    %c0_335 = arith.constant 0 : index
    %c0_336 = arith.constant 0 : index
    %c4_337 = arith.constant 4 : index
    %c2_338 = arith.constant 2 : index
    %336 = vector.load %arg2[%c0_335, %c0_336, %c4_337, %c2_338] : memref<3x1x20x20xf32, #tpu.memory_space<vmem>>, vector<1x1x16x16xf32>
    %337 = vector.shape_cast %336 : vector<1x1x16x16xf32> to vector<16x16xf32>
    %338 = arith.mulf %337, %335 : vector<16x16xf32>
    %339 = arith.addf %324, %338 : vector<16x16xf32>
    %c1_339 = arith.constant 1 : index
    %c0_340 = arith.constant 0 : index
    %c4_341 = arith.constant 4 : index
    %c2_342 = arith.constant 2 : index
    %340 = vector.load %arg2[%c1_339, %c0_340, %c4_341, %c2_342] : memref<3x1x20x20xf32, #tpu.memory_space<vmem>>, vector<1x1x16x16xf32>
    %341 = vector.shape_cast %340 : vector<1x1x16x16xf32> to vector<16x16xf32>
    %342 = arith.mulf %341, %335 : vector<16x16xf32>
    %343 = arith.addf %328, %342 : vector<16x16xf32>
    %c2_343 = arith.constant 2 : index
    %c0_344 = arith.constant 0 : index
    %c4_345 = arith.constant 4 : index
    %c2_346 = arith.constant 2 : index
    %344 = vector.load %arg2[%c2_343, %c0_344, %c4_345, %c2_346] : memref<3x1x20x20xf32, #tpu.memory_space<vmem>>, vector<1x1x16x16xf32>
    %345 = vector.shape_cast %344 : vector<1x1x16x16xf32> to vector<16x16xf32>
    %346 = arith.mulf %345, %335 : vector<16x16xf32>
    %347 = arith.addf %332, %346 : vector<16x16xf32>
    %c0_347 = arith.constant 0 : index
    %c23 = arith.constant 23 : index
    %c0_348 = arith.constant 0 : index
    %c0_349 = arith.constant 0 : index
    %348 = vector.load %arg3[%c0_347, %c23, %c0_348, %c0_349] : memref<1x25x16x16xbf16, #tpu.memory_space<vmem>>, vector<1x1x16x16xbf16>
    %349 = vector.shape_cast %348 : vector<1x1x16x16xbf16> to vector<16x16xbf16>
    %350 = arith.extf %349 : vector<16x16xbf16> to vector<16x16xf32>
    %c0_350 = arith.constant 0 : index
    %c0_351 = arith.constant 0 : index
    %c4_352 = arith.constant 4 : index
    %c3_353 = arith.constant 3 : index
    %351 = vector.load %arg2[%c0_350, %c0_351, %c4_352, %c3_353] : memref<3x1x20x20xf32, #tpu.memory_space<vmem>>, vector<1x1x16x16xf32>
    %352 = vector.shape_cast %351 : vector<1x1x16x16xf32> to vector<16x16xf32>
    %353 = arith.mulf %352, %350 : vector<16x16xf32>
    %354 = arith.addf %339, %353 : vector<16x16xf32>
    %c1_354 = arith.constant 1 : index
    %c0_355 = arith.constant 0 : index
    %c4_356 = arith.constant 4 : index
    %c3_357 = arith.constant 3 : index
    %355 = vector.load %arg2[%c1_354, %c0_355, %c4_356, %c3_357] : memref<3x1x20x20xf32, #tpu.memory_space<vmem>>, vector<1x1x16x16xf32>
    %356 = vector.shape_cast %355 : vector<1x1x16x16xf32> to vector<16x16xf32>
    %357 = arith.mulf %356, %350 : vector<16x16xf32>
    %358 = arith.addf %343, %357 : vector<16x16xf32>
    %c2_358 = arith.constant 2 : index
    %c0_359 = arith.constant 0 : index
    %c4_360 = arith.constant 4 : index
    %c3_361 = arith.constant 3 : index
    %359 = vector.load %arg2[%c2_358, %c0_359, %c4_360, %c3_361] : memref<3x1x20x20xf32, #tpu.memory_space<vmem>>, vector<1x1x16x16xf32>
    %360 = vector.shape_cast %359 : vector<1x1x16x16xf32> to vector<16x16xf32>
    %361 = arith.mulf %360, %350 : vector<16x16xf32>
    %362 = arith.addf %347, %361 : vector<16x16xf32>
    %c0_362 = arith.constant 0 : index
    %c24 = arith.constant 24 : index
    %c0_363 = arith.constant 0 : index
    %c0_364 = arith.constant 0 : index
    %363 = vector.load %arg3[%c0_362, %c24, %c0_363, %c0_364] : memref<1x25x16x16xbf16, #tpu.memory_space<vmem>>, vector<1x1x16x16xbf16>
    %364 = vector.shape_cast %363 : vector<1x1x16x16xbf16> to vector<16x16xbf16>
    %365 = arith.extf %364 : vector<16x16xbf16> to vector<16x16xf32>
    %c0_365 = arith.constant 0 : index
    %c0_366 = arith.constant 0 : index
    %c4_367 = arith.constant 4 : index
    %c4_368 = arith.constant 4 : index
    %366 = vector.load %arg2[%c0_365, %c0_366, %c4_367, %c4_368] : memref<3x1x20x20xf32, #tpu.memory_space<vmem>>, vector<1x1x16x16xf32>
    %367 = vector.shape_cast %366 : vector<1x1x16x16xf32> to vector<16x16xf32>
    %368 = arith.mulf %367, %365 : vector<16x16xf32>
    %369 = arith.addf %354, %368 : vector<16x16xf32>
    %c1_369 = arith.constant 1 : index
    %c0_370 = arith.constant 0 : index
    %c4_371 = arith.constant 4 : index
    %c4_372 = arith.constant 4 : index
    %370 = vector.load %arg2[%c1_369, %c0_370, %c4_371, %c4_372] : memref<3x1x20x20xf32, #tpu.memory_space<vmem>>, vector<1x1x16x16xf32>
    %371 = vector.shape_cast %370 : vector<1x1x16x16xf32> to vector<16x16xf32>
    %372 = arith.mulf %371, %365 : vector<16x16xf32>
    %373 = arith.addf %358, %372 : vector<16x16xf32>
    %c2_373 = arith.constant 2 : index
    %c0_374 = arith.constant 0 : index
    %c4_375 = arith.constant 4 : index
    %c4_376 = arith.constant 4 : index
    %374 = vector.load %arg2[%c2_373, %c0_374, %c4_375, %c4_376] : memref<3x1x20x20xf32, #tpu.memory_space<vmem>>, vector<1x1x16x16xf32>
    %375 = vector.shape_cast %374 : vector<1x1x16x16xf32> to vector<16x16xf32>
    %376 = arith.mulf %375, %365 : vector<16x16xf32>
    %377 = arith.addf %362, %376 : vector<16x16xf32>
    %c0_377 = arith.constant 0 : index
    %c0_378 = arith.constant 0 : index
    %c0_379 = arith.constant 0 : index
    %c0_380 = arith.constant 0 : index
    %378 = vector.load %arg4[%c0_377, %c0_378, %c0_379, %c0_380] : memref<3x1x16x16xf32, #tpu.memory_space<vmem>>, vector<1x1x16x16xf32>
    %379 = vector.shape_cast %378 : vector<1x1x16x16xf32> to vector<16x16xf32>
    %380 = vector.shape_cast %369 : vector<16x16xf32> to vector<1x1x16x16xf32>
    tpu.vector_store %arg4[%c0_377, %c0_378, %c0_379, %c0_380], %380 {strides = array<i32>} : memref<3x1x16x16xf32, #tpu.memory_space<vmem>>, vector<1x1x16x16xf32>,
    %c1_381 = arith.constant 1 : index
    %c0_382 = arith.constant 0 : index
    %c0_383 = arith.constant 0 : index
    %c0_384 = arith.constant 0 : index
    %381 = vector.load %arg4[%c1_381, %c0_382, %c0_383, %c0_384] : memref<3x1x16x16xf32, #tpu.memory_space<vmem>>, vector<1x1x16x16xf32>
    %382 = vector.shape_cast %381 : vector<1x1x16x16xf32> to vector<16x16xf32>
    %383 = vector.shape_cast %373 : vector<16x16xf32> to vector<1x1x16x16xf32>
    tpu.vector_store %arg4[%c1_381, %c0_382, %c0_383, %c0_384], %383 {strides = array<i32>} : memref<3x1x16x16xf32, #tpu.memory_space<vmem>>, vector<1x1x16x16xf32>,
    %c2_385 = arith.constant 2 : index
    %c0_386 = arith.constant 0 : index
    %c0_387 = arith.constant 0 : index
    %c0_388 = arith.constant 0 : index
    %384 = vector.load %arg4[%c2_385, %c0_386, %c0_387, %c0_388] : memref<3x1x16x16xf32, #tpu.memory_space<vmem>>, vector<1x1x16x16xf32>
    %385 = vector.shape_cast %384 : vector<1x1x16x16xf32> to vector<16x16xf32>
    %386 = vector.shape_cast %377 : vector<16x16xf32> to vector<1x1x16x16xf32>
    tpu.vector_store %arg4[%c2_385, %c0_386, %c0_387, %c0_388], %386 {strides = array<i32>} : memref<3x1x16x16xf32, #tpu.memory_space<vmem>>, vector<1x1x16x16xf32>,
    return
  }
  func.func @transform_0(%arg0: i32, %arg1: i32) -> (i32, i32, i32, i32) {
    %c0_i32 = arith.constant 0 : i32
    %c0_i32_0 = arith.constant 0 : i32
    %c0_i32_1 = arith.constant 0 : i32
    %c0_i32_2 = arith.constant 0 : i32
    return %c0_i32, %arg0, %c0_i32_0, %c0_i32_1 : i32, i32, i32, i32
  }
  func.func @transform_1(%arg0: i32, %arg1: i32) -> (i32, i32, i32, i32) {
    %c0_i32 = arith.constant 0 : i32
    %c0_i32_0 = arith.constant 0 : i32
    %c0_i32_1 = arith.constant 0 : i32
    return %arg0, %c0_i32, %arg1, %c0_i32_0 : i32, i32, i32, i32
  }
  func.func @transform_2(%arg0: i32, %arg1: i32) -> (i32, i32, i32, i32) {
    %c0_i32 = arith.constant 0 : i32
    %c0_i32_0 = arith.constant 0 : i32
    %c0_i32_1 = arith.constant 0 : i32
    return %c0_i32, %arg0, %arg1, %c0_i32_0 : i32, i32, i32, i32
  }
}

</mosaic_0001>

<llo_original>
// kernel: tpu_custom_call.1
$region0: #{tpu_custom_call.1}
  #allocation0 [shape = 'u32[]', space=smem, size = 0x4, offset = 0x4, fixed_abs, tag = 'smem constant byte address 0x4 - core index']
  #allocation1 [shape = 'u32[144,128]{1,0:T(1,128)}', space=vmem, size = 0x12000, scoped, tag = 'internal scratch']
  #allocation5 [shape = 's32[]', space=sflag, size = 0x4, offset = 0, fixed_abs, tag = 'sflag constant byte address 0x0 - dummy sync flag']
  %s0 = inlined_call_operand.vmem [shape: f32[3,2,20,20], index: 0, kind: input, shape index: {}]
  %s1 = inlined_call_operand.vmem [shape: bf16[2,25,16,16], index: 1, kind: input, shape index: {}]
  %s2 = inlined_call_operand.hbm [shape: f32[3,2,16,16], index: 2, kind: output, shape index: {}]
  %s3 = sld [smem:[#allocation0]]
  $region79: #{tpu_custom_call.1} parent=0
    _
  %s5 = ssub.s32 1, %s3
  %s6 = scalar_select 0, %s5, %s3
  $region1: #{tpu_custom_call.1} parent=0
    #allocation2 [shape = 'u8[73728]{0}', space=vmem, size = 0x12000, scoped, tag = 'input window, operand 0']
    #allocation3 [shape = 'u8[49152]{0}', space=vmem, size = 0xc000, scoped, tag = 'output window, operand 0']
    #allocation4 [shape = 's32[2]{0}', space=sflag, size = 0x8, scoped, tag = 'scoped memory for tpu_custom_call.1']
    %7 = vsyncpa [#allocation4], 0
    %s8 = scalar_lea.sflag [#allocation4], 1
    %9 = vsyncpa %s8, 0
    loop: start=0, step=1, limit=4
    $region2: #{tpu_custom_call.1} parent=1 // loop_pre_header
      _
    $region3: #{tpu_custom_call.1} parent=1 // loop_header
      %s11 = sphi 0, %s15
      %p12 = scmp.ge.s32.totalorder %s11, 4
      %s18 = sphi 0, %s30
      %s19 = sphi 0, %s26
      %s20 = sphi 0, %s18
      %s21 = sphi 0, %s19
      %s22 = sphi 0, %s20
      %s23 = sphi 0, %s21
      %s33 = sphi 0, %s35
      %s36 = sphi 0, %s33
      %s37 = sphi 0, %s36
      %s53 = sphi 0, %s37
      %s61 = sphi 0, %s63
      %s64 = sphi 0, %s61
      %s65 = sphi 0, %s64
      %s81 = sphi 0, %s65
      %s89 = sphi 0, %s91
      %s92 = sphi 0, %s89
      %s93 = sphi 0, %s92
      %s109 = sphi 0, %s93
    $region4: #{tpu_custom_call.1} parent=1 // loop_header_branch
      %14 = sbr.rel (%p12) target = $region8
    $region5: #{tpu_custom_call.1} parent=1 // loop_body
      %s16 = ssub.s32 %s11, 1
      %s17 = ssub.s32 %s11, 2
      %s24 = sadd.s32 1, %s19
      %p25 = scmp.ge.s32.totalorder %s24, 1
      %s26 = scalar_select %p25, 0, %s24
      %s27 = sadd.s32 1, %s18
      %s28 = scalar_select %p25, %s27, %s18
      %p29 = scmp.ge.s32.totalorder %s28, 2
      %s30 = scalar_select %p29, 0, %s28
      %s31 = ssub.s32 %s18, %s30
      %p32 = scmp.eq.s32.totalorder %s31, 0
      %s34 = sadd.s32 %s33, 1
      %s35 = scalar_select %p32, %s33, %s34
      %p38 = pneg %p32
      %p39 = scmp.eq.s32.totalorder %s11, 1
      %p40 = por %p38, %p39
      %p41 = scmp.ne.s32.totalorder %s33, %s36
      %p42 = scmp.eq.s32.totalorder %s11, 0
      %p43 = por %p41, %p42
      %p44 = scmp.ne.s32.totalorder %s33, %s36
      %p45 = scmp.eq.s32.totalorder %s16, 1
      %p46 = por %p44, %p45
      %p47 = scmp.ne.s32.totalorder %s36, %s37
      %p48 = scmp.eq.s32.totalorder %s16, 0
      %p49 = por %p47, %p48
      %p50 = scmp.ne.s32.totalorder %s36, %s37
      %p51 = scmp.eq.s32.totalorder %s17, 1
      %p52 = por %p50, %p51
      %p54 = scmp.ne.s32.totalorder %s37, %s53
      %p55 = scmp.eq.s32.totalorder %s17, 0
      %p56 = por %p54, %p55
      %s57 = ssub.s32 %s18, %s30
      %s58 = ssub.s32 %s19, %s26
      %s59 = sor.u32 %s57, %s58
      %p60 = scmp.eq.s32.totalorder %s59, 0
      %s62 = sadd.s32 %s61, 1
      %s63 = scalar_select %p60, %s61, %s62
      %p66 = pneg %p60
      %p67 = scmp.eq.s32.totalorder %s11, 1
      %p68 = por %p66, %p67
      %p69 = scmp.ne.s32.totalorder %s61, %s64
      %p70 = scmp.eq.s32.totalorder %s11, 0
      %p71 = por %p69, %p70
      %p72 = scmp.ne.s32.totalorder %s61, %s64
      %p73 = scmp.eq.s32.totalorder %s16, 1
      %p74 = por %p72, %p73
      %p75 = scmp.ne.s32.totalorder %s64, %s65
      %p76 = scmp.eq.s32.totalorder %s16, 0
      %p77 = por %p75, %p76
      %p78 = scmp.ne.s32.totalorder %s64, %s65
      %p79 = scmp.eq.s32.totalorder %s17, 1
      %p80 = por %p78, %p79
      %p82 = scmp.ne.s32.totalorder %s65, %s81
      %p83 = scmp.eq.s32.totalorder %s17, 0
      %p84 = por %p82, %p83
      %s85 = ssub.s32 %s18, %s30
      %s86 = ssub.s32 %s19, %s26
      %s87 = sor.u32 %s85, %s86
      %p88 = scmp.eq.s32.totalorder %s87, 0
      %s90 = sadd.s32 %s89, 1
      %s91 = scalar_select %p88, %s89, %s90
      %p94 = pneg %p88
      %p95 = scmp.eq.s32.totalorder %s11, 1
      %p96 = por %p94, %p95
      %p97 = scmp.ne.s32.totalorder %s89, %s92
      %p98 = scmp.eq.s32.totalorder %s11, 0
      %p99 = por %p97, %p98
      %p100 = scmp.ne.s32.totalorder %s89, %s92
      %p101 = scmp.eq.s32.totalorder %s16, 1
      %p102 = por %p100, %p101
      %p103 = scmp.ne.s32.totalorder %s92, %s93
      %p104 = scmp.eq.s32.totalorder %s16, 0
      %p105 = por %p103, %p104
      %p106 = scmp.ne.s32.totalorder %s92, %s93
      %p107 = scmp.eq.s32.totalorder %s17, 1
      %p108 = por %p106, %p107
      %p110 = scmp.ne.s32.totalorder %s93, %s109
      %p111 = scmp.eq.s32.totalorder %s17, 0
      %p112 = por %p110, %p111
      %p113 = scmp.le.s32.totalorder 1, %s11
      %p114 = scmp.lt.s32.totalorder %s11, 3
      %p115 = pnand %p113, %p114
      %p116 = pneg %p115
      // Predicated region
      $region9: #{tpu_custom_call.1} parent=5 // pred_check
        _
      $region10: #{tpu_custom_call.1} parent=5 // pred_check_branch
        %118 = sbr.rel (%p115) target = $region12
      $region11: #{tpu_custom_call.1} parent=5 // pred_region
        %s119 = ssub.s32 %s11, 1
      $region12: #{tpu_custom_call.1} parent=5 // pred_fallthru
        _
      %p120 = scmp.lt.s32.totalorder %s11, 2
      // Predicated region
      $region13: #{tpu_custom_call.1} parent=5 // pred_check
        %p121 = pneg %p120
      $region14: #{tpu_custom_call.1} parent=5 // pred_check_branch
        %123 = sbr.rel (%p121) target = $region16
      $region15: #{tpu_custom_call.1} parent=5 // pred_region
        // Predicated region
        $region17: #{tpu_custom_call.1} parent=15 // pred_check
          %p124 = pneg %p43
        $region18: #{tpu_custom_call.1} parent=15 // pred_check_branch
          %126 = sbr.rel (%p124) target = $region20
        $region19: #{tpu_custom_call.1} parent=15 // pred_region
          %s127 = sand.u32 %s33, 1
          %s128 = sand.u32 %s33, 1
          %s129 = smul.addr %s128, 72
          %s130 = scalar_lea.vmem [#allocation2], %s129
          %s131 = smul.addr %s18, 3
          %s132 = smul.addr %s131, 8
          %s133 = scalar_lea.vmem %s0, %s132
          // Predicated region
          $region21: #{tpu_custom_call.1} parent=19 // pred_check
            _
          $region22: #{tpu_custom_call.1} parent=19 // pred_check_branch
            %135 = sbr.rel (0) target = $region24
          $region23: #{tpu_custom_call.1} parent=19 // pred_region
            // Predicated region
            $region25: #{tpu_custom_call.1} parent=23 // pred_check
              _
            $region26: #{tpu_custom_call.1} parent=23 // pred_check_branch
              %137 = sbr.rel (0) target = $region28
            $region27: #{tpu_custom_call.1} parent=23 // pred_region
              // Predicated region
              $region40: #{tpu_custom_call.1} parent=27 // pred_check
                _
              $region41: #{tpu_custom_call.1} parent=27 // pred_check_branch
                %169 = sbr.rel (0) target = $region43
              $region42: #{tpu_custom_call.1} parent=27 // pred_region
                loop: start=0, step=1, limit=1
                $region44: #{tpu_custom_call.1} parent=42 // loop_pre_header
                  _
                $region45: #{tpu_custom_call.1} parent=42 // loop_header
                  %s171 = sphi 0, %s175
                  %p172 = scmp.ge.s32.totalorder %s171, 1
                  %s176 = sphi %s133, %s133
                  %s177 = sphi %s130, %s130
                $region46: #{tpu_custom_call.1} parent=42 // loop_header_branch
                  %174 = sbr.rel (%p172) target = $region50
                $region47: #{tpu_custom_call.1} parent=42 // loop_body
                  %v178 = vld [vmem:[%s176] sm:$0xff]
                  %179 = vst [vmem:[%s177] sm:$0xff] %v178
                  %v180 = vld [vmem:[%s176 + $0x8] sm:$0xff]
                  %181 = vst [vmem:[%s177 + $0x8] sm:$0xff] %v180
                  %v182 = vld [vmem:[%s176 + $0x10] sm:$0xff]
                  %183 = vst [vmem:[%s177 + $0x10] sm:$0xff] %v182
                  %v184 = vld [vmem:[%s176 + $0x30] sm:$0xff]
                  %185 = vst [vmem:[%s177 + $0x18] sm:$0xff] %v184
                  %v186 = vld [vmem:[%s176 + $0x38] sm:$0xff]
                  %187 = vst [vmem:[%s177 + $0x20] sm:$0xff] %v186
                  %v188 = vld [vmem:[%s176 + $0x40] sm:$0xff]
                  %189 = vst [vmem:[%s177 + $0x28] sm:$0xff] %v188
                  %v190 = vld [vmem:[%s176 + $0x60] sm:$0xff]
                  %191 = vst [vmem:[%s177 + $0x30] sm:$0xff] %v190
                  %v192 = vld [vmem:[%s176 + $0x68] sm:$0xff]
                  %193 = vst [vmem:[%s177 + $0x38] sm:$0xff] %v192
                  %v194 = vld [vmem:[%s176 + $0x70] sm:$0xff]
                  %195 = vst [vmem:[%s177 + $0x40] sm:$0xff] %v194
                $region48: #{tpu_custom_call.1} parent=42 // loop_footer
                  %s175 = sadd.s32 1, %s171
                $region49: #{tpu_custom_call.1} parent=42 // loop_footer_branch
                  %170 = sbr.rel target = $region45
                $region50: #{tpu_custom_call.1} parent=42 // loop_exit
                  _
              $region43: #{tpu_custom_call.1} parent=27 // pred_fallthru
                _
              // Predicated region
              $region51: #{tpu_custom_call.1} parent=27 // pred_check
                _
              $region52: #{tpu_custom_call.1} parent=27 // pred_check_branch
                %197 = sbr.rel target = $region54
              $region53: #{tpu_custom_call.1} parent=27 // pred_region
                _
              $region54: #{tpu_custom_call.1} parent=27 // pred_fallthru
                _
            $region28: #{tpu_custom_call.1} parent=23 // pred_fallthru
              _
            // Predicated region
            $region29: #{tpu_custom_call.1} parent=23 // pred_check
              _
            $region30: #{tpu_custom_call.1} parent=23 // pred_check_branch
              %139 = sbr.rel target = $region32
            $region31: #{tpu_custom_call.1} parent=23 // pred_region
              %s141 = ssub.s32 256, 1
              loop: start=0, step=1, limit=1
              $region33: #{tpu_custom_call.1} parent=31 // loop_pre_header
                _
              $region34: #{tpu_custom_call.1} parent=31 // loop_header
                %s143 = sphi 0, %s147
                %p144 = scmp.ge.s32.totalorder %s143, 1
                %s148 = sphi %s133, %s133
                %s149 = sphi %s130, %s130
              $region35: #{tpu_custom_call.1} parent=31 // loop_header_branch
                %146 = sbr.rel (%p144) target = $region39
              $region36: #{tpu_custom_call.1} parent=31 // loop_body
                %v150 = vld [vmem:[%s148] sm:%s141]
                %151 = vst [vmem:[%s149] sm:%s141] %v150
                %v152 = vld [vmem:[%s148 + $0x8] sm:%s141]
                %153 = vst [vmem:[%s149 + $0x8] sm:%s141] %v152
                %v154 = vld [vmem:[%s148 + $0x10] sm:%s141]
                %155 = vst [vmem:[%s149 + $0x10] sm:%s141] %v154
                %v156 = vld [vmem:[%s148 + $0x30] sm:%s141]
                %157 = vst [vmem:[%s149 + $0x18] sm:%s141] %v156
                %v158 = vld [vmem:[%s148 + $0x38] sm:%s141]
                %159 = vst [vmem:[%s149 + $0x20] sm:%s141] %v158
                %v160 = vld [vmem:[%s148 + $0x40] sm:%s141]
                %161 = vst [vmem:[%s149 + $0x28] sm:%s141] %v160
                %v162 = vld [vmem:[%s148 + $0x60] sm:%s141]
                %163 = vst [vmem:[%s149 + $0x30] sm:%s141] %v162
                %v164 = vld [vmem:[%s148 + $0x68] sm:%s141]
                %165 = vst [vmem:[%s149 + $0x38] sm:%s141] %v164
                %v166 = vld [vmem:[%s148 + $0x70] sm:%s141]
                %167 = vst [vmem:[%s149 + $0x40] sm:%s141] %v166
              $region37: #{tpu_custom_call.1} parent=31 // loop_footer
                %s147 = sadd.s32 1, %s143
              $region38: #{tpu_custom_call.1} parent=31 // loop_footer_branch
                %142 = sbr.rel target = $region34
              $region39: #{tpu_custom_call.1} parent=31 // loop_exit
                _
            $region32: #{tpu_custom_call.1} parent=23 // pred_fallthru
              _
          $region24: #{tpu_custom_call.1} parent=19 // pred_fallthru
            _
          %198 = vnop
        $region20: #{tpu_custom_call.1} parent=15 // pred_fallthru
          _
        // Predicated region
        $region55: #{tpu_custom_call.1} parent=15 // pred_check
          %p199 = pneg %p71
        $region56: #{tpu_custom_call.1} parent=15 // pred_check_branch
          %201 = sbr.rel (%p199) target = $region58
        $region57: #{tpu_custom_call.1} parent=15 // pred_region
          %s202 = smul.u32 2, %s19
          %p203 = scmp.lt.s32.totalorder %s18, 1
          %s204 = scalar_select %p203, %s18, 1
          %p205 = scmp.lt.s32.totalorder %s202, 1
          %s206 = scalar_select %p205, %s202, 1
          %s207 = smul.addr %s204, 50
          %s208 = sadd.s32 %s206, %s207
          %s209 = smul.addr %s208, 4
          %s210 = scalar_lea.vmem %s1, %s209
          %s211 = smul.u32 2, %s19
        $region58: #{tpu_custom_call.1} parent=15 // pred_fallthru
          _
      $region16: #{tpu_custom_call.1} parent=5 // pred_fallthru
        _
      %p212 = scmp.le.s32.totalorder 1, %s11
      %p213 = scmp.lt.s32.totalorder %s11, 3
      %p214 = pnand %p212, %p213
      %p215 = pneg %p214
      // Predicated region
      $region59: #{tpu_custom_call.1} parent=5 // pred_check
        _
      $region60: #{tpu_custom_call.1} parent=5 // pred_check_branch
        %217 = sbr.rel (%p214) target = $region62
      $region61: #{tpu_custom_call.1} parent=5 // pred_region
        %s218 = ssub.s32 %s11, 1
        %s219 = sand.u32 %s36, 1
        %s220 = sand.u32 %s36, 1
        %s221 = smul.addr %s220, 72
        %s222 = scalar_lea.vmem [#allocation2], %s221
        // Predicated region
        $region63: #{tpu_custom_call.1} parent=61 // pred_check
          %p223 = pneg %p49
        $region64: #{tpu_custom_call.1} parent=61 // pred_check_branch
          %225 = sbr.rel (%p223) target = $region66
        $region65: #{tpu_custom_call.1} parent=61 // pred_region
          _
        $region66: #{tpu_custom_call.1} parent=61 // pred_fallthru
          _
        %s226 = sand.u32 %s36, 1
        %s227 = sand.u32 %s36, 1
        %s228 = smul.addr %s227, 72
        %s229 = scalar_lea.vmem [#allocation2], %s228
        %p230 = pneg %p49
        %p231 = pneg %p46
        %s232 = smul.u32 2, %s21
        %p233 = scmp.lt.s32.totalorder %s20, 1
        %s234 = scalar_select %p233, %s20, 1
        %p235 = scmp.lt.s32.totalorder %s232, 1
        %s236 = scalar_select %p235, %s232, 1
        %s237 = smul.addr %s234, 50
        %s238 = sadd.s32 %s236, %s237
        %s239 = smul.addr %s238, 4
        %s240 = scalar_lea.vmem %s1, %s239
        %p241 = pneg %p77
        %p242 = pneg %p74
        %p243 = pneg %p105
        %p244 = pneg %p102
        %s245 = sand.u32 %s92, 1
        %s246 = scalar_lea.sflag [#allocation4], %s245
        %s247 = sand.u32 %s92, 1
        %s248 = smul.addr %s247, 48
        %s249 = scalar_lea.vmem [#allocation3], %s248
        %s250 = smul.u32 2, %s21
        %p251 = scmp.lt.s32.totalorder %s20, 1
        %s252 = scalar_select %p251, %s20, 1
        %p253 = scmp.lt.s32.totalorder %s250, 1
        %s254 = scalar_select %p253, %s250, 1
        %s255 = smul.addr %s252, 50
        %s256 = sadd.s32 %s254, %s255
        %s257 = smul.addr %s256, 4
        %s258 = scalar_lea.vmem %s1, %s257
        %s259 = smul.u32 2, %s21
        %s260 = smul.u32 2, %s21
        %v261 = vld [vmem:[%s258] sm:$0xf]
        %v262 = vld [vmem:[%s258 + $0x4] sm:$0xf]
        %v263 = vunpack.c.l.bf16 %v261
        %v264 = vunpack.c.l.bf16 %v262
        %v265 = vld [vmem:[%s222] sm:$0xff]
        %v266 = vld [vmem:[%s222 + $0x8] sm:$0xff]
        %v267 = vmul.f32 %v265, %v263
        %v268 = vmul.f32 %v266, %v264
        %v269 = vadd.f32 %v267, 0.0
        %v270 = vadd.f32 %v268, 0.0
        %s271 = scalar_lea.vmem %s222, 24 [#allocation2]
        %v272 = vld [vmem:[%s271] sm:$0xff]
        %v273 = vld [vmem:[%s271 + $0x8] sm:$0xff]
        %v274 = vmul.f32 %v272, %v263
        %v275 = vmul.f32 %v273, %v264
        %v276 = vadd.f32 %v274, 0.0
        %v277 = vadd.f32 %v275, 0.0
        %s278 = scalar_lea.vmem %s222, 48 [#allocation2]
        %v279 = vld [vmem:[%s278] sm:$0xff]
        %v280 = vld [vmem:[%s278 + $0x8] sm:$0xff]
        %v281 = vmul.f32 %v279, %v263
        %v282 = vmul.f32 %v280, %v264
        %v283 = vadd.f32 %v281, 0.0
        %v284 = vadd.f32 %v282, 0.0
        %s285 = scalar_lea.vmem %s258, 8
        %v286 = vld [vmem:[%s285] sm:$0xf]
        %v287 = vld [vmem:[%s285 + $0x4] sm:$0xf]
        %v288 = vunpack.c.l.bf16 %v286
        %v289 = vunpack.c.l.bf16 %v287
        %292 = vrot.lane.b32.xlu0 %v288, 1
        %v293 = vpop.permute.xlu0 %292
        %294 = vrot.lane.b32.xlu0 %v289, 1
        %v295 = vpop.permute.xlu0 %294
        %v298 = vmul.f32 %v265, %v293
        %v299 = vmul.f32 %v266, %v295
        %302 = vrot.lane.b32.xlu0 %v298, 127
        %v303 = vpop.permute.xlu0 %302
        %304 = vrot.lane.b32.xlu0 %v299, 127
        %v305 = vpop.permute.xlu0 %304
        %v308 = vadd.f32 %v269, %v303
        %v309 = vadd.f32 %v270, %v305
        %v310 = vmul.f32 %v272, %v293
        %v311 = vmul.f32 %v273, %v295
        %314 = vrot.lane.b32.xlu0 %v310, 127
        %v315 = vpop.permute.xlu0 %314
        %316 = vrot.lane.b32.xlu0 %v311, 127
        %v317 = vpop.permute.xlu0 %316
        %v320 = vadd.f32 %v276, %v315
        %v321 = vadd.f32 %v277, %v317
        %v322 = vmul.f32 %v279, %v293
        %v323 = vmul.f32 %v280, %v295
        %326 = vrot.lane.b32.xlu0 %v322, 127
        %v327 = vpop.permute.xlu0 %326
        %328 = vrot.lane.b32.xlu0 %v323, 127
        %v329 = vpop.permute.xlu0 %328
        %v332 = vadd.f32 %v283, %v327
        %v333 = vadd.f32 %v284, %v329
        %s334 = scalar_lea.vmem %s258, 16
        %v335 = vld [vmem:[%s334] sm:$0xf]
        %v336 = vld [vmem:[%s334 + $0x4] sm:$0xf]
        %v337 = vunpack.c.l.bf16 %v335
        %v338 = vunpack.c.l.bf16 %v336
        %341 = vrot.lane.b32.xlu0 %v337, 2
        %v342 = vpop.permute.xlu0 %341
        %343 = vrot.lane.b32.xlu0 %v338, 2
        %v344 = vpop.permute.xlu0 %343
        %v347 = vmul.f32 %v265, %v342
        %v348 = vmul.f32 %v266, %v344
        %351 = vrot.lane.b32.xlu0 %v347, 126
        %v352 = vpop.permute.xlu0 %351
        %353 = vrot.lane.b32.xlu0 %v348, 126
        %v354 = vpop.permute.xlu0 %353
        %v357 = vadd.f32 %v308, %v352
        %v358 = vadd.f32 %v309, %v354
        %v359 = vmul.f32 %v272, %v342
        %v360 = vmul.f32 %v273, %v344
        %363 = vrot.lane.b32.xlu0 %v359, 126
        %v364 = vpop.permute.xlu0 %363
        %365 = vrot.lane.b32.xlu0 %v360, 126
        %v366 = vpop.permute.xlu0 %365
        %v369 = vadd.f32 %v320, %v364
        %v370 = vadd.f32 %v321, %v366
        %v371 = vmul.f32 %v279, %v342
        %v372 = vmul.f32 %v280, %v344
        %375 = vrot.lane.b32.xlu0 %v371, 126
        %v376 = vpop.permute.xlu0 %375
        %377 = vrot.lane.b32.xlu0 %v372, 126
        %v378 = vpop.permute.xlu0 %377
        %v381 = vadd.f32 %v332, %v376
        %v382 = vadd.f32 %v333, %v378
        %s383 = scalar_lea.vmem %s258, 24
        %v384 = vld [vmem:[%s383] sm:$0xf]
        %v385 = vld [vmem:[%s383 + $0x4] sm:$0xf]
        %v386 = vunpack.c.l.bf16 %v384
        %v387 = vunpack.c.l.bf16 %v385
        %390 = vrot.lane.b32.xlu0 %v386, 3
        %v391 = vpop.permute.xlu0 %390
        %392 = vrot.lane.b32.xlu0 %v387, 3
        %v393 = vpop.permute.xlu0 %392
        %v396 = vmul.f32 %v265, %v391
        %v397 = vmul.f32 %v266, %v393
        %400 = vrot.lane.b32.xlu0 %v396, 125
        %v401 = vpop.permute.xlu0 %400
        %402 = vrot.lane.b32.xlu0 %v397, 125
        %v403 = vpop.permute.xlu0 %402
        %v406 = vadd.f32 %v357, %v401
        %v407 = vadd.f32 %v358, %v403
        %v408 = vmul.f32 %v272, %v391
        %v409 = vmul.f32 %v273, %v393
        %412 = vrot.lane.b32.xlu0 %v408, 125
        %v413 = vpop.permute.xlu0 %412
        %414 = vrot.lane.b32.xlu0 %v409, 125
        %v415 = vpop.permute.xlu0 %414
        %v418 = vadd.f32 %v369, %v413
        %v419 = vadd.f32 %v370, %v415
        %v420 = vmul.f32 %v279, %v391
        %v421 = vmul.f32 %v280, %v393
        %424 = vrot.lane.b32.xlu0 %v420, 125
        %v425 = vpop.permute.xlu0 %424
        %426 = vrot.lane.b32.xlu0 %v421, 125
        %v427 = vpop.permute.xlu0 %426
        %v430 = vadd.f32 %v381, %v425
        %v431 = vadd.f32 %v382, %v427
        %s432 = scalar_lea.vmem %s258, 32
        %v433 = vld [vmem:[%s432] sm:$0xf]
        %v434 = vld [vmem:[%s432 + $0x4] sm:$0xf]
        %v435 = vunpack.c.l.bf16 %v433
        %v436 = vunpack.c.l.bf16 %v434
        %439 = vrot.lane.b32.xlu0 %v435, 4
        %v440 = vpop.permute.xlu0 %439
        %441 = vrot.lane.b32.xlu0 %v436, 4
        %v442 = vpop.permute.xlu0 %441
        %v445 = vmul.f32 %v265, %v440
        %v446 = vmul.f32 %v266, %v442
        %449 = vrot.lane.b32.xlu0 %v445, 124
        %v450 = vpop.permute.xlu0 %449
        %451 = vrot.lane.b32.xlu0 %v446, 124
        %v452 = vpop.permute.xlu0 %451
        %v455 = vadd.f32 %v406, %v450
        %v456 = vadd.f32 %v407, %v452
        %v457 = vmul.f32 %v272, %v440
        %v458 = vmul.f32 %v273, %v442
        %461 = vrot.lane.b32.xlu0 %v457, 124
        %v462 = vpop.permute.xlu0 %461
        %463 = vrot.lane.b32.xlu0 %v458, 124
        %v464 = vpop.permute.xlu0 %463
        %v467 = vadd.f32 %v418, %v462
        %v468 = vadd.f32 %v419, %v464
        %v469 = vmul.f32 %v279, %v440
        %v470 = vmul.f32 %v280, %v442
        %473 = vrot.lane.b32.xlu0 %v469, 124
        %v474 = vpop.permute.xlu0 %473
        %475 = vrot.lane.b32.xlu0 %v470, 124
        %v476 = vpop.permute.xlu0 %475
        %v479 = vadd.f32 %v430, %v474
        %v480 = vadd.f32 %v431, %v476
        %s481 = scalar_lea.vmem %s258, 40
        %v482 = vld [vmem:[%s481] sm:$0xf]
        %v483 = vld [vmem:[%s481 + $0x4] sm:$0xf]
        %v484 = vunpack.c.l.bf16 %v482
        %v485 = vunpack.c.l.bf16 %v483
        %v486 = vld [vmem:[%s222 + $0x1] sm:$0xff]
        %v487 = vld [vmem:[%s222 + $0x9] sm:$0xff]
        %v488 = vmul.f32 %v486, %v484
        %v489 = vmul.f32 %v487, %v485
        %v490 = vadd.f32 %v455, %v488
        %v491 = vadd.f32 %v456, %v489
        %v492 = vld [vmem:[%s271 + $0x1] sm:$0xff]
        %v493 = vld [vmem:[%s271 + $0x9] sm:$0xff]
        %v494 = vmul.f32 %v492, %v484
        %v495 = vmul.f32 %v493, %v485
        %v496 = vadd.f32 %v467, %v494
        %v497 = vadd.f32 %v468, %v495
        %v498 = vld [vmem:[%s278 + $0x1] sm:$0xff]
        %v499 = vld [vmem:[%s278 + $0x9] sm:$0xff]
        %v500 = vmul.f32 %v498, %v484
        %v501 = vmul.f32 %v499, %v485
        %v502 = vadd.f32 %v479, %v500
        %v503 = vadd.f32 %v480, %v501
        %s504 = scalar_lea.vmem %s258, 48
        %v505 = vld [vmem:[%s504] sm:$0xf]
        %v506 = vld [vmem:[%s504 + $0x4] sm:$0xf]
        %v507 = vunpack.c.l.bf16 %v505
        %v508 = vunpack.c.l.bf16 %v506
        %511 = vrot.lane.b32.xlu0 %v507, 1
        %v512 = vpop.permute.xlu0 %511
        %513 = vrot.lane.b32.xlu0 %v508, 1
        %v514 = vpop.permute.xlu0 %513
        %v517 = vmul.f32 %v486, %v512
        %v518 = vmul.f32 %v487, %v514
        %521 = vrot.lane.b32.xlu0 %v517, 127
        %v522 = vpop.permute.xlu0 %521
        %523 = vrot.lane.b32.xlu0 %v518, 127
        %v524 = vpop.permute.xlu0 %523
        %v527 = vadd.f32 %v490, %v522
        %v528 = vadd.f32 %v491, %v524
        %v529 = vmul.f32 %v492, %v512
        %v530 = vmul.f32 %v493, %v514
        %533 = vrot.lane.b32.xlu0 %v529, 127
        %v534 = vpop.permute.xlu0 %533
        %535 = vrot.lane.b32.xlu0 %v530, 127
        %v536 = vpop.permute.xlu0 %535
        %v539 = vadd.f32 %v496, %v534
        %v540 = vadd.f32 %v497, %v536
        %v541 = vmul.f32 %v498, %v512
        %v542 = vmul.f32 %v499, %v514
        %545 = vrot.lane.b32.xlu0 %v541, 127
        %v546 = vpop.permute.xlu0 %545
        %547 = vrot.lane.b32.xlu0 %v542, 127
        %v548 = vpop.permute.xlu0 %547
        %v551 = vadd.f32 %v502, %v546
        %v552 = vadd.f32 %v503, %v548
        %s553 = scalar_lea.vmem %s258, 56
        %v554 = vld [vmem:[%s553] sm:$0xf]
        %v555 = vld [vmem:[%s553 + $0x4] sm:$0xf]
        %v556 = vunpack.c.l.bf16 %v554
        %v557 = vunpack.c.l.bf16 %v555
        %560 = vrot.lane.b32.xlu0 %v556, 2
        %v561 = vpop.permute.xlu0 %560
        %562 = vrot.lane.b32.xlu0 %v557, 2
        %v563 = vpop.permute.xlu0 %562
        %v566 = vmul.f32 %v486, %v561
        %v567 = vmul.f32 %v487, %v563
        %570 = vrot.lane.b32.xlu0 %v566, 126
        %v571 = vpop.permute.xlu0 %570
        %572 = vrot.lane.b32.xlu0 %v567, 126
        %v573 = vpop.permute.xlu0 %572
        %v576 = vadd.f32 %v527, %v571
        %v577 = vadd.f32 %v528, %v573
        %v578 = vmul.f32 %v492, %v561
        %v579 = vmul.f32 %v493, %v563
        %582 = vrot.lane.b32.xlu0 %v578, 126
        %v583 = vpop.permute.xlu0 %582
        %584 = vrot.lane.b32.xlu0 %v579, 126
        %v585 = vpop.permute.xlu0 %584
        %v588 = vadd.f32 %v539, %v583
        %v589 = vadd.f32 %v540, %v585
        %v590 = vmul.f32 %v498, %v561
        %v591 = vmul.f32 %v499, %v563
        %594 = vrot.lane.b32.xlu0 %v590, 126
        %v595 = vpop.permute.xlu0 %594
        %596 = vrot.lane.b32.xlu0 %v591, 126
        %v597 = vpop.permute.xlu0 %596
        %v600 = vadd.f32 %v551, %v595
        %v601 = vadd.f32 %v552, %v597
        %s602 = scalar_lea.vmem %s258, 64
        %v603 = vld [vmem:[%s602] sm:$0xf]
        %v604 = vld [vmem:[%s602 + $0x4] sm:$0xf]
        %v605 = vunpack.c.l.bf16 %v603
        %v606 = vunpack.c.l.bf16 %v604
        %609 = vrot.lane.b32.xlu0 %v605, 3
        %v610 = vpop.permute.xlu0 %609
        %611 = vrot.lane.b32.xlu0 %v606, 3
        %v612 = vpop.permute.xlu0 %611
        %v615 = vmul.f32 %v486, %v610
        %v616 = vmul.f32 %v487, %v612
        %619 = vrot.lane.b32.xlu0 %v615, 125
        %v620 = vpop.permute.xlu0 %619
        %621 = vrot.lane.b32.xlu0 %v616, 125
        %v622 = vpop.permute.xlu0 %621
        %v625 = vadd.f32 %v576, %v620
        %v626 = vadd.f32 %v577, %v622
        %v627 = vmul.f32 %v492, %v610
        %v628 = vmul.f32 %v493, %v612
        %631 = vrot.lane.b32.xlu0 %v627, 125
        %v632 = vpop.permute.xlu0 %631
        %633 = vrot.lane.b32.xlu0 %v628, 125
        %v634 = vpop.permute.xlu0 %633
        %v637 = vadd.f32 %v588, %v632
        %v638 = vadd.f32 %v589, %v634
        %v639 = vmul.f32 %v498, %v610
        %v640 = vmul.f32 %v499, %v612
        %643 = vrot.lane.b32.xlu0 %v639, 125
        %v644 = vpop.permute.xlu0 %643
        %645 = vrot.lane.b32.xlu0 %v640, 125
        %v646 = vpop.permute.xlu0 %645
        %v649 = vadd.f32 %v600, %v644
        %v650 = vadd.f32 %v601, %v646
        %s651 = scalar_lea.vmem %s258, 72
        %v652 = vld [vmem:[%s651] sm:$0xf]
        %v653 = vld [vmem:[%s651 + $0x4] sm:$0xf]
        %v654 = vunpack.c.l.bf16 %v652
        %v655 = vunpack.c.l.bf16 %v653
        %658 = vrot.lane.b32.xlu0 %v654, 4
        %v659 = vpop.permute.xlu0 %658
        %660 = vrot.lane.b32.xlu0 %v655, 4
        %v661 = vpop.permute.xlu0 %660
        %v664 = vmul.f32 %v486, %v659
        %v665 = vmul.f32 %v487, %v661
        %668 = vrot.lane.b32.xlu0 %v664, 124
        %v669 = vpop.permute.xlu0 %668
        %670 = vrot.lane.b32.xlu0 %v665, 124
        %v671 = vpop.permute.xlu0 %670
        %v674 = vadd.f32 %v625, %v669
        %v675 = vadd.f32 %v626, %v671
        %v676 = vmul.f32 %v492, %v659
        %v677 = vmul.f32 %v493, %v661
        %680 = vrot.lane.b32.xlu0 %v676, 124
        %v681 = vpop.permute.xlu0 %680
        %682 = vrot.lane.b32.xlu0 %v677, 124
        %v683 = vpop.permute.xlu0 %682
        %v686 = vadd.f32 %v637, %v681
        %v687 = vadd.f32 %v638, %v683
        %v688 = vmul.f32 %v498, %v659
        %v689 = vmul.f32 %v499, %v661
        %692 = vrot.lane.b32.xlu0 %v688, 124
        %v693 = vpop.permute.xlu0 %692
        %694 = vrot.lane.b32.xlu0 %v689, 124
        %v695 = vpop.permute.xlu0 %694
        %v698 = vadd.f32 %v649, %v693
        %v699 = vadd.f32 %v650, %v695
        %s700 = scalar_lea.vmem %s258, 80
        %v701 = vld [vmem:[%s700] sm:$0xf]
        %v702 = vld [vmem:[%s700 + $0x4] sm:$0xf]
        %v703 = vunpack.c.l.bf16 %v701
        %v704 = vunpack.c.l.bf16 %v702
        %v705 = vld [vmem:[%s222 + $0x2] sm:$0xff]
        %v706 = vld [vmem:[%s222 + $0xa] sm:$0xff]
        %v707 = vmul.f32 %v705, %v703
        %v708 = vmul.f32 %v706, %v704
        %v709 = vadd.f32 %v674, %v707
        %v710 = vadd.f32 %v675, %v708
        %v711 = vld [vmem:[%s271 + $0x2] sm:$0xff]
        %v712 = vld [vmem:[%s271 + $0xa] sm:$0xff]
        %v713 = vmul.f32 %v711, %v703
        %v714 = vmul.f32 %v712, %v704
        %v715 = vadd.f32 %v686, %v713
        %v716 = vadd.f32 %v687, %v714
        %v717 = vld [vmem:[%s278 + $0x2] sm:$0xff]
        %v718 = vld [vmem:[%s278 + $0xa] sm:$0xff]
        %v719 = vmul.f32 %v717, %v703
        %v720 = vmul.f32 %v718, %v704
        %v721 = vadd.f32 %v698, %v719
        %v722 = vadd.f32 %v699, %v720
        %s723 = scalar_lea.vmem %s258, 88
        %v724 = vld [vmem:[%s723] sm:$0xf]
        %v725 = vld [vmem:[%s723 + $0x4] sm:$0xf]
        %v726 = vunpack.c.l.bf16 %v724
        %v727 = vunpack.c.l.bf16 %v725
        %730 = vrot.lane.b32.xlu0 %v726, 1
        %v731 = vpop.permute.xlu0 %730
        %732 = vrot.lane.b32.xlu0 %v727, 1
        %v733 = vpop.permute.xlu0 %732
        %v736 = vmul.f32 %v705, %v731
        %v737 = vmul.f32 %v706, %v733
        %740 = vrot.lane.b32.xlu0 %v736, 127
        %v741 = vpop.permute.xlu0 %740
        %742 = vrot.lane.b32.xlu0 %v737, 127
        %v743 = vpop.permute.xlu0 %742
        %v746 = vadd.f32 %v709, %v741
        %v747 = vadd.f32 %v710, %v743
        %v748 = vmul.f32 %v711, %v731
        %v749 = vmul.f32 %v712, %v733
        %752 = vrot.lane.b32.xlu0 %v748, 127
        %v753 = vpop.permute.xlu0 %752
        %754 = vrot.lane.b32.xlu0 %v749, 127
        %v755 = vpop.permute.xlu0 %754
        %v758 = vadd.f32 %v715, %v753
        %v759 = vadd.f32 %v716, %v755
        %v760 = vmul.f32 %v717, %v731
        %v761 = vmul.f32 %v718, %v733
        %764 = vrot.lane.b32.xlu0 %v760, 127
        %v765 = vpop.permute.xlu0 %764
        %766 = vrot.lane.b32.xlu0 %v761, 127
        %v767 = vpop.permute.xlu0 %766
        %v770 = vadd.f32 %v721, %v765
        %v771 = vadd.f32 %v722, %v767
        %s772 = scalar_lea.vmem %s258, 96
        %v773 = vld [vmem:[%s772] sm:$0xf]
        %v774 = vld [vmem:[%s772 + $0x4] sm:$0xf]
        %v775 = vunpack.c.l.bf16 %v773
        %v776 = vunpack.c.l.bf16 %v774
        %779 = vrot.lane.b32.xlu0 %v775, 2
        %v780 = vpop.permute.xlu0 %779
        %781 = vrot.lane.b32.xlu0 %v776, 2
        %v782 = vpop.permute.xlu0 %781
        %v785 = vmul.f32 %v705, %v780
        %v786 = vmul.f32 %v706, %v782
        %789 = vrot.lane.b32.xlu0 %v785, 126
        %v790 = vpop.permute.xlu0 %789
        %791 = vrot.lane.b32.xlu0 %v786, 126
        %v792 = vpop.permute.xlu0 %791
        %v795 = vadd.f32 %v746, %v790
        %v796 = vadd.f32 %v747, %v792
        %v797 = vmul.f32 %v711, %v780
        %v798 = vmul.f32 %v712, %v782
        %801 = vrot.lane.b32.xlu0 %v797, 126
        %v802 = vpop.permute.xlu0 %801
        %803 = vrot.lane.b32.xlu0 %v798, 126
        %v804 = vpop.permute.xlu0 %803
        %v807 = vadd.f32 %v758, %v802
        %v808 = vadd.f32 %v759, %v804
        %v809 = vmul.f32 %v717, %v780
        %v810 = vmul.f32 %v718, %v782
        %813 = vrot.lane.b32.xlu0 %v809, 126
        %v814 = vpop.permute.xlu0 %813
        %815 = vrot.lane.b32.xlu0 %v810, 126
        %v816 = vpop.permute.xlu0 %815
        %v819 = vadd.f32 %v770, %v814
        %v820 = vadd.f32 %v771, %v816
        %s821 = scalar_lea.vmem %s258, 104
        %v822 = vld [vmem:[%s821] sm:$0xf]
        %v823 = vld [vmem:[%s821 + $0x4] sm:$0xf]
        %v824 = vunpack.c.l.bf16 %v822
        %v825 = vunpack.c.l.bf16 %v823
        %828 = vrot.lane.b32.xlu0 %v824, 3
        %v829 = vpop.permute.xlu0 %828
        %830 = vrot.lane.b32.xlu0 %v825, 3
        %v831 = vpop.permute.xlu0 %830
        %v834 = vmul.f32 %v705, %v829
        %v835 = vmul.f32 %v706, %v831
        %838 = vrot.lane.b32.xlu0 %v834, 125
        %v839 = vpop.permute.xlu0 %838
        %840 = vrot.lane.b32.xlu0 %v835, 125
        %v841 = vpop.permute.xlu0 %840
        %v844 = vadd.f32 %v795, %v839
        %v845 = vadd.f32 %v796, %v841
        %v846 = vmul.f32 %v711, %v829
        %v847 = vmul.f32 %v712, %v831
        %850 = vrot.lane.b32.xlu0 %v846, 125
        %v851 = vpop.permute.xlu0 %850
        %852 = vrot.lane.b32.xlu0 %v847, 125
        %v853 = vpop.permute.xlu0 %852
        %v856 = vadd.f32 %v807, %v851
        %v857 = vadd.f32 %v808, %v853
        %v858 = vmul.f32 %v717, %v829
        %v859 = vmul.f32 %v718, %v831
        %862 = vrot.lane.b32.xlu0 %v858, 125
        %v863 = vpop.permute.xlu0 %862
        %864 = vrot.lane.b32.xlu0 %v859, 125
        %v865 = vpop.permute.xlu0 %864
        %v868 = vadd.f32 %v819, %v863
        %v869 = vadd.f32 %v820, %v865
        %s870 = scalar_lea.vmem %s258, 112
        %v871 = vld [vmem:[%s870] sm:$0xf]
        %v872 = vld [vmem:[%s870 + $0x4] sm:$0xf]
        %v873 = vunpack.c.l.bf16 %v871
        %v874 = vunpack.c.l.bf16 %v872
        %877 = vrot.lane.b32.xlu0 %v873, 4
        %v878 = vpop.permute.xlu0 %877
        %879 = vrot.lane.b32.xlu0 %v874, 4
        %v880 = vpop.permute.xlu0 %879
        %v883 = vmul.f32 %v705, %v878
        %v884 = vmul.f32 %v706, %v880
        %887 = vrot.lane.b32.xlu0 %v883, 124
        %v888 = vpop.permute.xlu0 %887
        %889 = vrot.lane.b32.xlu0 %v884, 124
        %v890 = vpop.permute.xlu0 %889
        %v893 = vadd.f32 %v844, %v888
        %v894 = vadd.f32 %v845, %v890
        %v895 = vmul.f32 %v711, %v878
        %v896 = vmul.f32 %v712, %v880
        %899 = vrot.lane.b32.xlu0 %v895, 124
        %v900 = vpop.permute.xlu0 %899
        %901 = vrot.lane.b32.xlu0 %v896, 124
        %v902 = vpop.permute.xlu0 %901
        %v905 = vadd.f32 %v856, %v900
        %v906 = vadd.f32 %v857, %v902
        %v907 = vmul.f32 %v717, %v878
        %v908 = vmul.f32 %v718, %v880
        %911 = vrot.lane.b32.xlu0 %v907, 124
        %v912 = vpop.permute.xlu0 %911
        %913 = vrot.lane.b32.xlu0 %v908, 124
        %v914 = vpop.permute.xlu0 %913
        %v917 = vadd.f32 %v868, %v912
        %v918 = vadd.f32 %v869, %v914
        %s919 = scalar_lea.vmem %s258, 120
        %v920 = vld [vmem:[%s919] sm:$0xf]
        %v921 = vld [vmem:[%s919 + $0x4] sm:$0xf]
        %v922 = vunpack.c.l.bf16 %v920
        %v923 = vunpack.c.l.bf16 %v921
        %v924 = vld [vmem:[%s222 + $0x3] sm:$0xff]
        %v925 = vld [vmem:[%s222 + $0xb] sm:$0xff]
        %v926 = vmul.f32 %v924, %v922
        %v927 = vmul.f32 %v925, %v923
        %v928 = vadd.f32 %v893, %v926
        %v929 = vadd.f32 %v894, %v927
        %v930 = vld [vmem:[%s271 + $0x3] sm:$0xff]
        %v931 = vld [vmem:[%s271 + $0xb] sm:$0xff]
        %v932 = vmul.f32 %v930, %v922
        %v933 = vmul.f32 %v931, %v923
        %v934 = vadd.f32 %v905, %v932
        %v935 = vadd.f32 %v906, %v933
        %v936 = vld [vmem:[%s278 + $0x3] sm:$0xff]
        %v937 = vld [vmem:[%s278 + $0xb] sm:$0xff]
        %v938 = vmul.f32 %v936, %v922
        %v939 = vmul.f32 %v937, %v923
        %v940 = vadd.f32 %v917, %v938
        %v941 = vadd.f32 %v918, %v939
        %s942 = scalar_lea.vmem %s258, 128
        %v943 = vld [vmem:[%s942] sm:$0xf]
        %v944 = vld [vmem:[%s942 + $0x4] sm:$0xf]
        %v945 = vunpack.c.l.bf16 %v943
        %v946 = vunpack.c.l.bf16 %v944
        %949 = vrot.lane.b32.xlu0 %v945, 1
        %v950 = vpop.permute.xlu0 %949
        %951 = vrot.lane.b32.xlu0 %v946, 1
        %v952 = vpop.permute.xlu0 %951
        %v955 = vmul.f32 %v924, %v950
        %v956 = vmul.f32 %v925, %v952
        %959 = vrot.lane.b32.xlu0 %v955, 127
        %v960 = vpop.permute.xlu0 %959
        %961 = vrot.lane.b32.xlu0 %v956, 127
        %v962 = vpop.permute.xlu0 %961
        %v965 = vadd.f32 %v928, %v960
        %v966 = vadd.f32 %v929, %v962
        %v967 = vmul.f32 %v930, %v950
        %v968 = vmul.f32 %v931, %v952
        %971 = vrot.lane.b32.xlu0 %v967, 127
        %v972 = vpop.permute.xlu0 %971
        %973 = vrot.lane.b32.xlu0 %v968, 127
        %v974 = vpop.permute.xlu0 %973
        %v977 = vadd.f32 %v934, %v972
        %v978 = vadd.f32 %v935, %v974
        %v979 = vmul.f32 %v936, %v950
        %v980 = vmul.f32 %v937, %v952
        %983 = vrot.lane.b32.xlu0 %v979, 127
        %v984 = vpop.permute.xlu0 %983
        %985 = vrot.lane.b32.xlu0 %v980, 127
        %v986 = vpop.permute.xlu0 %985
        %v989 = vadd.f32 %v940, %v984
        %v990 = vadd.f32 %v941, %v986
        %s991 = scalar_lea.vmem %s258, 136
        %v992 = vld [vmem:[%s991] sm:$0xf]
        %v993 = vld [vmem:[%s991 + $0x4] sm:$0xf]
        %v994 = vunpack.c.l.bf16 %v992
        %v995 = vunpack.c.l.bf16 %v993
        %998 = vrot.lane.b32.xlu0 %v994, 2
        %v999 = vpop.permute.xlu0 %998
        %1000 = vrot.lane.b32.xlu0 %v995, 2
        %v1001 = vpop.permute.xlu0 %1000
        %v1004 = vmul.f32 %v924, %v999
        %v1005 = vmul.f32 %v925, %v1001
        %1008 = vrot.lane.b32.xlu0 %v1004, 126
        %v1009 = vpop.permute.xlu0 %1008
        %1010 = vrot.lane.b32.xlu0 %v1005, 126
        %v1011 = vpop.permute.xlu0 %1010
        %v1014 = vadd.f32 %v965, %v1009
        %v1015 = vadd.f32 %v966, %v1011
        %v1016 = vmul.f32 %v930, %v999
        %v1017 = vmul.f32 %v931, %v1001
        %1020 = vrot.lane.b32.xlu0 %v1016, 126
        %v1021 = vpop.permute.xlu0 %1020
        %1022 = vrot.lane.b32.xlu0 %v1017, 126
        %v1023 = vpop.permute.xlu0 %1022
        %v1026 = vadd.f32 %v977, %v1021
        %v1027 = vadd.f32 %v978, %v1023
        %v1028 = vmul.f32 %v936, %v999
        %v1029 = vmul.f32 %v937, %v1001
        %1032 = vrot.lane.b32.xlu0 %v1028, 126
        %v1033 = vpop.permute.xlu0 %1032
        %1034 = vrot.lane.b32.xlu0 %v1029, 126
        %v1035 = vpop.permute.xlu0 %1034
        %v1038 = vadd.f32 %v989, %v1033
        %v1039 = vadd.f32 %v990, %v1035
        %s1040 = scalar_lea.vmem %s258, 144
        %v1041 = vld [vmem:[%s1040] sm:$0xf]
        %v1042 = vld [vmem:[%s1040 + $0x4] sm:$0xf]
        %v1043 = vunpack.c.l.bf16 %v1041
        %v1044 = vunpack.c.l.bf16 %v1042
        %1047 = vrot.lane.b32.xlu0 %v1043, 3
        %v1048 = vpop.permute.xlu0 %1047
        %1049 = vrot.lane.b32.xlu0 %v1044, 3
        %v1050 = vpop.permute.xlu0 %1049
        %v1053 = vmul.f32 %v924, %v1048
        %v1054 = vmul.f32 %v925, %v1050
        %1057 = vrot.lane.b32.xlu0 %v1053, 125
        %v1058 = vpop.permute.xlu0 %1057
        %1059 = vrot.lane.b32.xlu0 %v1054, 125
        %v1060 = vpop.permute.xlu0 %1059
        %v1063 = vadd.f32 %v1014, %v1058
        %v1064 = vadd.f32 %v1015, %v1060
        %v1065 = vmul.f32 %v930, %v1048
        %v1066 = vmul.f32 %v931, %v1050
        %1069 = vrot.lane.b32.xlu0 %v1065, 125
        %v1070 = vpop.permute.xlu0 %1069
        %1071 = vrot.lane.b32.xlu0 %v1066, 125
        %v1072 = vpop.permute.xlu0 %1071
        %v1075 = vadd.f32 %v1026, %v1070
        %v1076 = vadd.f32 %v1027, %v1072
        %v1077 = vmul.f32 %v936, %v1048
        %v1078 = vmul.f32 %v937, %v1050
        %1081 = vrot.lane.b32.xlu0 %v1077, 125
        %v1082 = vpop.permute.xlu0 %1081
        %1083 = vrot.lane.b32.xlu0 %v1078, 125
        %v1084 = vpop.permute.xlu0 %1083
        %v1087 = vadd.f32 %v1038, %v1082
        %v1088 = vadd.f32 %v1039, %v1084
        %s1089 = scalar_lea.vmem %s258, 152
        %v1090 = vld [vmem:[%s1089] sm:$0xf]
        %v1091 = vld [vmem:[%s1089 + $0x4] sm:$0xf]
        %v1092 = vunpack.c.l.bf16 %v1090
        %v1093 = vunpack.c.l.bf16 %v1091
        %1096 = vrot.lane.b32.xlu0 %v1092, 4
        %v1097 = vpop.permute.xlu0 %1096
        %1098 = vrot.lane.b32.xlu0 %v1093, 4
        %v1099 = vpop.permute.xlu0 %1098
        %v1102 = vmul.f32 %v924, %v1097
        %v1103 = vmul.f32 %v925, %v1099
        %1106 = vrot.lane.b32.xlu0 %v1102, 124
        %v1107 = vpop.permute.xlu0 %1106
        %1108 = vrot.lane.b32.xlu0 %v1103, 124
        %v1109 = vpop.permute.xlu0 %1108
        %v1112 = vadd.f32 %v1063, %v1107
        %v1113 = vadd.f32 %v1064, %v1109
        %v1114 = vmul.f32 %v930, %v1097
        %v1115 = vmul.f32 %v931, %v1099
        %1118 = vrot.lane.b32.xlu0 %v1114, 124
        %v1119 = vpop.permute.xlu0 %1118
        %1120 = vrot.lane.b32.xlu0 %v1115, 124
        %v1121 = vpop.permute.xlu0 %1120
        %v1124 = vadd.f32 %v1075, %v1119
        %v1125 = vadd.f32 %v1076, %v1121
        %v1126 = vmul.f32 %v936, %v1097
        %v1127 = vmul.f32 %v937, %v1099
        %1130 = vrot.lane.b32.xlu0 %v1126, 124
        %v1131 = vpop.permute.xlu0 %1130
        %1132 = vrot.lane.b32.xlu0 %v1127, 124
        %v1133 = vpop.permute.xlu0 %1132
        %v1136 = vadd.f32 %v1087, %v1131
        %v1137 = vadd.f32 %v1088, %v1133
        %s1138 = scalar_lea.vmem %s258, 160
        %v1139 = vld [vmem:[%s1138] sm:$0xf]
        %v1140 = vld [vmem:[%s1138 + $0x4] sm:$0xf]
        %v1141 = vunpack.c.l.bf16 %v1139
        %v1142 = vunpack.c.l.bf16 %v1140
        %v1143 = vld [vmem:[%s222 + $0x4] sm:$0xff]
        %v1144 = vld [vmem:[%s222 + $0xc] sm:$0xff]
        %v1145 = vmul.f32 %v1143, %v1141
        %v1146 = vmul.f32 %v1144, %v1142
        %v1147 = vadd.f32 %v1112, %v1145
        %v1148 = vadd.f32 %v1113, %v1146
        %v1149 = vld [vmem:[%s271 + $0x4] sm:$0xff]
        %v1150 = vld [vmem:[%s271 + $0xc] sm:$0xff]
        %v1151 = vmul.f32 %v1149, %v1141
        %v1152 = vmul.f32 %v1150, %v1142
        %v1153 = vadd.f32 %v1124, %v1151
        %v1154 = vadd.f32 %v1125, %v1152
        %v1155 = vld [vmem:[%s278 + $0x4] sm:$0xff]
        %v1156 = vld [vmem:[%s278 + $0xc] sm:$0xff]
        %v1157 = vmul.f32 %v1155, %v1141
        %v1158 = vmul.f32 %v1156, %v1142
        %v1159 = vadd.f32 %v1136, %v1157
        %v1160 = vadd.f32 %v1137, %v1158
        %s1161 = scalar_lea.vmem %s258, 168
        %v1162 = vld [vmem:[%s1161] sm:$0xf]
        %v1163 = vld [vmem:[%s1161 + $0x4] sm:$0xf]
        %v1164 = vunpack.c.l.bf16 %v1162
        %v1165 = vunpack.c.l.bf16 %v1163
        %1168 = vrot.lane.b32.xlu0 %v1164, 1
        %v1169 = vpop.permute.xlu0 %1168
        %1170 = vrot.lane.b32.xlu0 %v1165, 1
        %v1171 = vpop.permute.xlu0 %1170
        %v1174 = vmul.f32 %v1143, %v1169
        %v1175 = vmul.f32 %v1144, %v1171
        %1178 = vrot.lane.b32.xlu0 %v1174, 127
        %v1179 = vpop.permute.xlu0 %1178
        %1180 = vrot.lane.b32.xlu0 %v1175, 127
        %v1181 = vpop.permute.xlu0 %1180
        %v1184 = vadd.f32 %v1147, %v1179
        %v1185 = vadd.f32 %v1148, %v1181
        %v1186 = vmul.f32 %v1149, %v1169
        %v1187 = vmul.f32 %v1150, %v1171
        %1190 = vrot.lane.b32.xlu0 %v1186, 127
        %v1191 = vpop.permute.xlu0 %1190
        %1192 = vrot.lane.b32.xlu0 %v1187, 127
        %v1193 = vpop.permute.xlu0 %1192
        %v1196 = vadd.f32 %v1153, %v1191
        %v1197 = vadd.f32 %v1154, %v1193
        %v1198 = vmul.f32 %v1155, %v1169
        %v1199 = vmul.f32 %v1156, %v1171
        %1202 = vrot.lane.b32.xlu0 %v1198, 127
        %v1203 = vpop.permute.xlu0 %1202
        %1204 = vrot.lane.b32.xlu0 %v1199, 127
        %v1205 = vpop.permute.xlu0 %1204
        %v1208 = vadd.f32 %v1159, %v1203
        %v1209 = vadd.f32 %v1160, %v1205
        %s1210 = scalar_lea.vmem %s258, 176
        %v1211 = vld [vmem:[%s1210] sm:$0xf]
        %v1212 = vld [vmem:[%s1210 + $0x4] sm:$0xf]
        %v1213 = vunpack.c.l.bf16 %v1211
        %v1214 = vunpack.c.l.bf16 %v1212
        %1217 = vrot.lane.b32.xlu0 %v1213, 2
        %v1218 = vpop.permute.xlu0 %1217
        %1219 = vrot.lane.b32.xlu0 %v1214, 2
        %v1220 = vpop.permute.xlu0 %1219
        %v1223 = vmul.f32 %v1143, %v1218
        %v1224 = vmul.f32 %v1144, %v1220
        %1227 = vrot.lane.b32.xlu0 %v1223, 126
        %v1228 = vpop.permute.xlu0 %1227
        %1229 = vrot.lane.b32.xlu0 %v1224, 126
        %v1230 = vpop.permute.xlu0 %1229
        %v1233 = vadd.f32 %v1184, %v1228
        %v1234 = vadd.f32 %v1185, %v1230
        %v1235 = vmul.f32 %v1149, %v1218
        %v1236 = vmul.f32 %v1150, %v1220
        %1239 = vrot.lane.b32.xlu0 %v1235, 126
        %v1240 = vpop.permute.xlu0 %1239
        %1241 = vrot.lane.b32.xlu0 %v1236, 126
        %v1242 = vpop.permute.xlu0 %1241
        %v1245 = vadd.f32 %v1196, %v1240
        %v1246 = vadd.f32 %v1197, %v1242
        %v1247 = vmul.f32 %v1155, %v1218
        %v1248 = vmul.f32 %v1156, %v1220
        %1251 = vrot.lane.b32.xlu0 %v1247, 126
        %v1252 = vpop.permute.xlu0 %1251
        %1253 = vrot.lane.b32.xlu0 %v1248, 126
        %v1254 = vpop.permute.xlu0 %1253
        %v1257 = vadd.f32 %v1208, %v1252
        %v1258 = vadd.f32 %v1209, %v1254
        %s1259 = scalar_lea.vmem %s258, 184
        %v1260 = vld [vmem:[%s1259] sm:$0xf]
        %v1261 = vld [vmem:[%s1259 + $0x4] sm:$0xf]
        %v1262 = vunpack.c.l.bf16 %v1260
        %v1263 = vunpack.c.l.bf16 %v1261
        %1266 = vrot.lane.b32.xlu0 %v1262, 3
        %v1267 = vpop.permute.xlu0 %1266
        %1268 = vrot.lane.b32.xlu0 %v1263, 3
        %v1269 = vpop.permute.xlu0 %1268
        %v1272 = vmul.f32 %v1143, %v1267
        %v1273 = vmul.f32 %v1144, %v1269
        %1276 = vrot.lane.b32.xlu0 %v1272, 125
        %v1277 = vpop.permute.xlu0 %1276
        %1278 = vrot.lane.b32.xlu0 %v1273, 125
        %v1279 = vpop.permute.xlu0 %1278
        %v1282 = vadd.f32 %v1233, %v1277
        %v1283 = vadd.f32 %v1234, %v1279
        %v1284 = vmul.f32 %v1149, %v1267
        %v1285 = vmul.f32 %v1150, %v1269
        %1288 = vrot.lane.b32.xlu0 %v1284, 125
        %v1289 = vpop.permute.xlu0 %1288
        %1290 = vrot.lane.b32.xlu0 %v1285, 125
        %v1291 = vpop.permute.xlu0 %1290
        %v1294 = vadd.f32 %v1245, %v1289
        %v1295 = vadd.f32 %v1246, %v1291
        %v1296 = vmul.f32 %v1155, %v1267
        %v1297 = vmul.f32 %v1156, %v1269
        %1300 = vrot.lane.b32.xlu0 %v1296, 125
        %v1301 = vpop.permute.xlu0 %1300
        %1302 = vrot.lane.b32.xlu0 %v1297, 125
        %v1303 = vpop.permute.xlu0 %1302
        %v1306 = vadd.f32 %v1257, %v1301
        %v1307 = vadd.f32 %v1258, %v1303
        %s1308 = scalar_lea.vmem %s258, 192
        %v1309 = vld [vmem:[%s1308] sm:$0xf]
        %v1310 = vld [vmem:[%s1308 + $0x4] sm:$0xf]
        %v1311 = vunpack.c.l.bf16 %v1309
        %v1312 = vunpack.c.l.bf16 %v1310
        %1315 = vrot.lane.b32.xlu0 %v1311, 4
        %v1316 = vpop.permute.xlu0 %1315
        %1317 = vrot.lane.b32.xlu0 %v1312, 4
        %v1318 = vpop.permute.xlu0 %1317
        %v1321 = vmul.f32 %v1143, %v1316
        %v1322 = vmul.f32 %v1144, %v1318
        %1325 = vrot.lane.b32.xlu0 %v1321, 124
        %v1326 = vpop.permute.xlu0 %1325
        %1327 = vrot.lane.b32.xlu0 %v1322, 124
        %v1328 = vpop.permute.xlu0 %1327
        %v1331 = vadd.f32 %v1282, %v1326
        %v1332 = vadd.f32 %v1283, %v1328
        %v1333 = vmul.f32 %v1149, %v1316
        %v1334 = vmul.f32 %v1150, %v1318
        %1337 = vrot.lane.b32.xlu0 %v1333, 124
        %v1338 = vpop.permute.xlu0 %1337
        %1339 = vrot.lane.b32.xlu0 %v1334, 124
        %v1340 = vpop.permute.xlu0 %1339
        %v1343 = vadd.f32 %v1294, %v1338
        %v1344 = vadd.f32 %v1295, %v1340
        %v1345 = vmul.f32 %v1155, %v1316
        %v1346 = vmul.f32 %v1156, %v1318
        %1349 = vrot.lane.b32.xlu0 %v1345, 124
        %v1350 = vpop.permute.xlu0 %1349
        %1351 = vrot.lane.b32.xlu0 %v1346, 124
        %v1352 = vpop.permute.xlu0 %1351
        %v1355 = vadd.f32 %v1306, %v1350
        %v1356 = vadd.f32 %v1307, %v1352
        %vm1357 = vcmask 130048
        %1358 = vst.msk [vmem:[%s249] sm:$0xff] %vm1357, %v1331
        %1359 = vst.msk [vmem:[%s249 + $0x8] sm:$0xff] %vm1357, %v1332
        %s1360 = scalar_lea.vmem %s249, 16 [#allocation3]
        %1361 = vst.msk [vmem:[%s1360] sm:$0xff] %vm1357, %v1343
        %1362 = vst.msk [vmem:[%s1360 + $0x8] sm:$0xff] %vm1357, %v1344
        %s1363 = scalar_lea.vmem %s249, 32 [#allocation3]
        %1364 = vst.msk [vmem:[%s1363] sm:$0xff] %vm1357, %v1355
        %1365 = vst.msk [vmem:[%s1363 + $0x8] sm:$0xff] %vm1357, %v1356
        %s1366 = sand.u32 %s92, 1
        %s1367 = scalar_lea.sflag [#allocation4], %s1366
        %s1368 = sand.u32 %s92, 1
        %s1369 = smul.addr %s1368, 48
        %s1370 = scalar_lea.vmem [#allocation3], %s1369
        // Predicated region
        $region67: #{tpu_custom_call.1} parent=61 // pred_check
          %p1371 = pneg %p102
        $region68: #{tpu_custom_call.1} parent=61 // pred_check_branch
          %1373 = sbr.rel (%p1371) target = $region70
        $region69: #{tpu_custom_call.1} parent=61 // pred_region
          #allocation6 [shape = 'u32[6]{0}', space=smem, size = 0x18, scoped, tag = 'DMA stride descriptor']
          %s1374 = smul.u32 2, %s21
          %s1376 = ssub.s32 768, 768
          %1377 = vsyncadd %s1367, %s1376
          %s1378 = smul.addr %s20, 2
          %s1379 = sadd.s32 %s1374, %s1378
          %s1380 = smul.addr %s1379, 128
          %s1381 = scalar_lea.hbm %s2, %s1380
          %s1383 = sshll.u32 1, 14
          %s1384 = sxor.u32 4294967295, %s1383
          %s1387 = sshll.u32 7, 18
          %s1388 = sxor.u32 4294967295, %s1387
          %s1389 = sand.u32 0, %s1388
          %s1391 = sor.u32 %s1389, 0
          %s1392 = sshll.u32 %s1370, 4
          %s1393 = int_to_ptr.vmem [resolvable:$true] %s1392
          %1399 = sst [smem:[#allocation6]] 256
          %s1400 = scalar_lea.smem [#allocation6], 1
          %1401 = sst [smem:[%s1400]] 512
          %s1402 = scalar_lea.smem [#allocation6], 2
          %1403 = sst [smem:[%s1402]] 2
          %s1404 = scalar_lea.smem [#allocation6], 3
          %1405 = sst [smem:[%s1404]] 128
          %s1406 = scalar_lea.smem [#allocation6], 4
          %1407 = sst [smem:[%s1406]] 128
          %s1408 = scalar_lea.smem [#allocation6], 5
          %1409 = sst [smem:[%s1408]] 8
          %1411 = dma.general %s1393, 768, %s1381, %s1367, 131072, [#allocation6], %s1391, 0
        $region70: #{tpu_custom_call.1} parent=61 // pred_fallthru
          _
      $region62: #{tpu_custom_call.1} parent=5 // pred_fallthru
        _
      %p1412 = scmp.le.s32.totalorder 2, %s11
      // Predicated region
      $region71: #{tpu_custom_call.1} parent=5 // pred_check
        %p1413 = pneg %p1412
      $region72: #{tpu_custom_call.1} parent=5 // pred_check_branch
        %1415 = sbr.rel (%p1413) target = $region74
      $region73: #{tpu_custom_call.1} parent=5 // pred_region
        %s1416 = ssub.s32 %s11, 2
        // Predicated region
        $region75: #{tpu_custom_call.1} parent=73 // pred_check
          %p1417 = pneg %p108
        $region76: #{tpu_custom_call.1} parent=73 // pred_check_branch
          %1419 = sbr.rel (%p1417) target = $region78
        $region77: #{tpu_custom_call.1} parent=73 // pred_region
          %s1420 = sand.u32 %s93, 1
          %s1421 = scalar_lea.sflag [#allocation4], %s1420
          %s1422 = sand.u32 %s93, 1
          %s1423 = smul.addr %s1422, 48
          %s1424 = scalar_lea.vmem [#allocation3], %s1423
          %1425 = dma.done %s1421, 768
        $region78: #{tpu_custom_call.1} parent=73 // pred_fallthru
          _
      $region74: #{tpu_custom_call.1} parent=5 // pred_fallthru
        _
    $region6: #{tpu_custom_call.1} parent=1 // loop_footer
      %s15 = sadd.s32 1, %s11
    $region7: #{tpu_custom_call.1} parent=1 // loop_footer_branch
      %10 = sbr.rel target = $region3
    $region8: #{tpu_custom_call.1} parent=1 // loop_exit
      _
    %1426 = vsyncpa [#allocation4], 1
    %s1427 = scalar_lea.sflag [#allocation4], 1
    %1428 = vsyncpa %s1427, 1

</llo_original>
